<compile_context>
chip_gen: v7x
topology: tpu7x:2x2x1
jax: 0.10.0
libtpu: 0.0.40
codegen_flags: <defaults>
</compile_context>

<pallas_src>
import math
import functools

import jax
import jax.numpy as jnp
from jax.experimental import pallas as pl
from jax.experimental.pallas import tpu as pltpu


def _mha_flash_kernel(xq_ref, xkv_ref, wq_ref, wk_ref, wv_ref, wo_ref,
                      out_ref,
                      q_scr, m_scr, l_scr, acc_scr,
                      *, scale, compute_dtype):
    """One grid step of fused causal MHA.

    xq_ref : [1, tq, d]   query-rows tile of x
    xkv_ref: [1, tkv, d]  key/value-rows tile of x
    wq/wk/wv_ref: [h, d, k]   per-head projection weights
    wo_ref : [h, k, d]        per-head output-projection weights
    out_ref: [1, tq, d]
    q_scr  : [h, tq, k]  (compute_dtype)  scaled Q, persists across kv steps
    m_scr  : [h, tq, 1]  (f32)            running row max
    l_scr  : [h, tq, 1]  (f32)            running softmax denominator
    acc_scr: [h, tq, k]  (f32)            un-normalized output accumulator
    """
    h = wq_ref.shape[0]
    d = xq_ref.shape[2]
    tq = q_scr.shape[1]
    tkv = xkv_ref.shape[1]

    iq = pl.program_id(1)
    ikv = pl.program_id(2)
    n_kv = pl.num_programs(2)

    q_start = iq * tq
    kv_start = ikv * tkv

    # ---- once per q tile: project Q (scale folded in) and reset the stats.
    @pl.when(ikv == 0)
    def _init():
        x_q = jnp.broadcast_to(xq_ref[0].astype(compute_dtype), (h, tq, d))
        q = jnp.einsum('hqd,hdk->hqk', x_q, wq_ref[...].astype(compute_dtype),
                       preferred_element_type=jnp.float32)
        q_scr[...] = (q * scale).astype(compute_dtype)
        m_scr[...] = jnp.full(m_scr.shape, -jnp.inf, dtype=m_scr.dtype)
        l_scr[...] = jnp.zeros(l_scr.shape, dtype=l_scr.dtype)
        acc_scr[...] = jnp.zeros(acc_scr.shape, dtype=acc_scr.dtype)

    # ---- per KV tile: project K/V and do one online-softmax update.
    #      Tiles entirely above the causal diagonal contribute nothing: skip.
    @pl.when(kv_start <= q_start + tq - 1)
    def _update():
        x_kv = jnp.broadcast_to(xkv_ref[0].astype(compute_dtype), (h, tkv, d))
        kt = jnp.einsum('hsd,hdk->hsk', x_kv,
                        wk_ref[...].astype(compute_dtype),
                        preferred_element_type=jnp.float32).astype(compute_dtype)
        vt = jnp.einsum('hsd,hdk->hsk', x_kv,
                        wv_ref[...].astype(compute_dtype),
                        preferred_element_type=jnp.float32).astype(compute_dtype)

        # [h, tq, tkv]: contract over the per-head dim; no explicit K^T.
        logits = jnp.einsum('hqk,hsk->hqs', q_scr[...], kt,
                            preferred_element_type=jnp.float32)

        row = q_start + jax.lax.broadcasted_iota(jnp.int32, (tq, tkv), 0)
        col = kv_start + jax.lax.broadcasted_iota(jnp.int32, (tq, tkv), 1)
        logits = jnp.where((col <= row)[None], logits, -jnp.inf)

        m_prev = m_scr[...]
        m_new = jnp.maximum(m_prev, jnp.max(logits, axis=-1, keepdims=True))
        alpha = jnp.exp(m_prev - m_new)
        p = jnp.exp(logits - m_new)                       # [h, tq, tkv] f32
        l_scr[...] = alpha * l_scr[...] + jnp.sum(p, axis=-1, keepdims=True)
        acc_scr[...] = alpha * acc_scr[...] + jnp.einsum(
            'hqs,hsk->hqk', p.astype(compute_dtype), vt,
            preferred_element_type=jnp.float32)
        m_scr[...] = m_new

    # ---- once per q tile: normalize, apply the output projection, store a
    #      full lane-dense [tq, d] slab.
    @pl.when(ikv == n_kv - 1)
    def _finalize():
        o = acc_scr[...] * pl.reciprocal(l_scr[...], approx=True)  # [h, tq, k]
        y = jnp.einsum('hqk,hkd->hqd', o.astype(compute_dtype),
                       wo_ref[...].astype(compute_dtype),
                       preferred_element_type=jnp.float32)         # [h, tq, d]
        out_ref[0] = jnp.sum(y, axis=0).astype(out_ref.dtype)


def mha_pallas(x, p_i, p_o, *, h, tq=None, tkv=None,
               compute_dtype=jnp.bfloat16):
    b, m, d = x.shape
    assert d % h == 0
    k = d // h

    if tq is None:
        tq = min(m, 256)
    if tkv is None:
        tkv = min(m, 256)
    assert m % tq == 0 and m % tkv == 0
    assert tq == m or tq % 8 == 0
    assert tkv == m or tkv % 8 == 0

    # Repack the fused [d, 3d] projection (per-head [q|k|v] column blocks of
    # width k) into per-head weights so heads become a batch dim in-kernel.
    w = p_i.reshape(d, h, 3, k)
    w_q = jnp.transpose(w[:, :, 0, :], (1, 0, 2))   # [h, d, k]
    w_k = jnp.transpose(w[:, :, 1, :], (1, 0, 2))   # [h, d, k]
    w_v = jnp.transpose(w[:, :, 2, :], (1, 0, 2))   # [h, d, k]
    w_o = p_o.reshape(h, k, d)                      # [h, k, d]

    grid = (b, m // tq, m // tkv)
    kernel = functools.partial(_mha_flash_kernel,
                               scale=1.0 / math.sqrt(k),
                               compute_dtype=compute_dtype)
    const = lambda ib, iq, ikv: (0, 0, 0)           # weights: same block always

    return pl.pallas_call(
        kernel,
        out_shape=jax.ShapeDtypeStruct((b, m, d), x.dtype),
        grid_spec=pltpu.PrefetchScalarGridSpec(
            num_scalar_prefetch=0,
            grid=grid,
            in_specs=[
                pl.BlockSpec((1, tq, d), lambda ib, iq, ikv: (ib, iq, 0)),
                pl.BlockSpec((1, tkv, d), lambda ib, iq, ikv: (ib, ikv, 0)),
                pl.BlockSpec((h, d, k), const),
                pl.BlockSpec((h, d, k), const),
                pl.BlockSpec((h, d, k), const),
                pl.BlockSpec((h, k, d), const),
            ],
            out_specs=pl.BlockSpec((1, tq, d), lambda ib, iq, ikv: (ib, iq, 0)),
            scratch_shapes=[
                pltpu.VMEM((h, tq, k), compute_dtype),   # scaled Q tile
                pltpu.VMEM((h, tq, 1), jnp.float32),     # running row max
                pltpu.VMEM((h, tq, 1), jnp.float32),     # running denominator
                pltpu.VMEM((h, tq, k), jnp.float32),     # output accumulator
            ]),
        compiler_params=pltpu.CompilerParams(
            dimension_semantics=("parallel", "parallel", "arbitrary"),
            vmem_limit_bytes=48 * 1024 * 1024),
    )(x, x, w_q, w_k, w_v, w_o)


def mha_reference(x, p_i, p_o, *, h):
    """Pure-JAX transliteration of the PyTorch forward (dropout = identity)."""
    b, m, d = x.shape
    k = d // h
    t = (x @ p_i).reshape(b, m, h, 3 * k).transpose(0, 2, 1, 3)   # [b, h, m, 3k]
    q, kk, v = t[..., :k], t[..., k:2 * k], t[..., 2 * k:]
    logits = jnp.einsum('bhmk,bhnk->bhmn', q, kk) / math.sqrt(k)
    mask = jnp.tril(jnp.ones((m, m), dtype=bool))
    logits = jnp.where(mask[None, None], logits, -jnp.inf)
    w = jax.nn.softmax(logits, axis=-1)
    y = jnp.einsum('bhmn,bhnk->bhmk', w, v).transpose(0, 2, 1, 3).reshape(b, m, d)
    return y @ p_o


if __name__ == "__main__":
    key = jax.random.PRNGKey(0)
    kx1, kx2, kpi, kpo = jax.random.split(key, 4)

    b, d, h = 2, 32, 4
    bound_i = math.sqrt(6.0 / (3 * d))
    bound_o = math.sqrt(6.0 / d)
    p_i = jax.random.uniform(kpi, (d, 3 * d), jnp.float32, -bound_i, bound_i)
    p_o = jax.random.uniform(kpo, (d, d), jnp.float32, -bound_o, bound_o)

    # Config A: tiny module-spec shape (m=8), single-tile path, f32 operands.
    m_a = 8
    x_a = jax.random.normal(kx1, (b, m_a, d), jnp.float32)
    out_a = jax.block_until_ready(
        mha_pallas(x_a, p_i, p_o, h=h, compute_dtype=jnp.float32))
    ref_a = mha_reference(x_a, p_i, p_o, h=h)
    assert jnp.allclose(out_a, ref_a, atol=5e-3, rtol=5e-3), "f32 single-tile mismatch"

    # Config B: m=64 with 16x16 tiles -> grid (2, 4, 4); exercises the online
    # softmax across KV tiles and the causal-tile skipping.
    m_b = 64
    x_b = jax.random.normal(kx2, (b, m_b, d), jnp.float32)
    ref_b = mha_reference(x_b, p_i, p_o, h=h)

    out_b32 = jax.block_until_ready(
        mha_pallas(x_b, p_i, p_o, h=h, tq=16, tkv=16, compute_dtype=jnp.float32))
    assert jnp.allclose(out_b32, ref_b, atol=5e-3, rtol=5e-3), "f32 tiled mismatch"

    out_bbf = jax.block_until_ready(
        mha_pallas(x_b, p_i, p_o, h=h, tq=16, tkv=16, compute_dtype=jnp.bfloat16))
    assert jnp.allclose(out_bbf, ref_b, atol=3e-2, rtol=3e-2), "bf16 tiled mismatch"

    print("KERNEL_OK")
</pallas_src>

<mosaic_0001>
module attributes {stable_mosaic.version = 11 : i64} {
  func.func @_mha_flash_kernel(%arg0: i32, %arg1: i32, %arg2: i32, %arg3: memref<1x8x32xf32, #tpu.memory_space<vmem>>, %arg4: memref<1x8x32xf32, #tpu.memory_space<vmem>>, %arg5: memref<4x32x8xf32, #tpu.memory_space<vmem>>, %arg6: memref<4x32x8xf32, #tpu.memory_space<vmem>>, %arg7: memref<4x32x8xf32, #tpu.memory_space<vmem>>, %arg8: memref<4x8x32xf32, #tpu.memory_space<vmem>>, %arg9: memref<1x8x32xf32, #tpu.memory_space<vmem>>, %arg10: memref<4x8x8xf32, #tpu.memory_space<vmem>>, %arg11: memref<4x8x1xf32, #tpu.memory_space<vmem>>, %arg12: memref<4x8x1xf32, #tpu.memory_space<vmem>>, %arg13: memref<4x8x8xf32, #tpu.memory_space<vmem>>) attributes {dimension_semantics = [#tpu.dimension_semantics<parallel>, #tpu.dimension_semantics<parallel>, #tpu.dimension_semantics<arbitrary>], iteration_bounds = array<i64: 2, 1, 1>, scalar_prefetch = 0 : i64, scratch_operands = 4 : i64, tpu.core_type = #tpu.core_type<tc>, window_params = [{transform_indices = @transform_0, window_bounds = array<i64: 1, 8, 32>}, {transform_indices = @transform_1, window_bounds = array<i64: 1, 8, 32>}, {pipeline_mode = #tpu.pipeline_mode<synchronous>, transform_indices = @transform_2, window_bounds = array<i64: 4, 32, 8>}, {pipeline_mode = #tpu.pipeline_mode<synchronous>, transform_indices = @transform_3, window_bounds = array<i64: 4, 32, 8>}, {pipeline_mode = #tpu.pipeline_mode<synchronous>, transform_indices = @transform_4, window_bounds = array<i64: 4, 32, 8>}, {pipeline_mode = #tpu.pipeline_mode<synchronous>, transform_indices = @transform_5, window_bounds = array<i64: 4, 8, 32>}, {transform_indices = @transform_6, window_bounds = array<i64: 1, 8, 32>}]} {
    %c8_i32 = arith.constant 8 : i32
    %0 = arith.muli %arg1, %c8_i32 : i32
    %c8_i32_0 = arith.constant 8 : i32
    %1 = arith.muli %arg2, %c8_i32_0 : i32
    %c0_i32 = arith.constant 0 : i32
    %2 = arith.cmpi eq, %arg2, %c0_i32 : i32
    %3 = arith.extui %2 : i1 to i32
    %c0_i32_1 = arith.constant 0 : i32
    %4 = arith.cmpi ne, %3, %c0_i32_1 : i32
    scf.if %4 {
      %c0 = arith.constant 0 : index
      %c0_6 = arith.constant 0 : index
      %c0_7 = arith.constant 0 : index
      %13 = vector.load %arg3[%c0, %c0_6, %c0_7] : memref<1x8x32xf32, #tpu.memory_space<vmem>>, vector<1x8x32xf32>
      %14 = vector.shape_cast %13 : vector<1x8x32xf32> to vector<8x32xf32>
      %15 = vector.shape_cast %14 : vector<8x32xf32> to vector<1x8x32xf32>
      %16 = vector.broadcast %15 : vector<1x8x32xf32> to vector<4x8x32xf32>
      %c0_8 = arith.constant 0 : index
      %c0_9 = arith.constant 0 : index
      %c0_10 = arith.constant 0 : index
      %17 = vector.load %arg5[%c0_8, %c0_9, %c0_10] : memref<4x32x8xf32, #tpu.memory_space<vmem>>, vector<4x32x8xf32>
      "tpu.trace_start"() <{level = 10 : i32, message = "hqd,hdk->hqk"}> : () -> ()
      %cst = arith.constant dense<0.000000e+00> : vector<4x8x8xf32>
      %18 = tpu.matmul %16, %17, %cst {dimension_numbers = #tpu.dot_dimension_numbers<[2], [1], [1], [2], [0, 0, 0, 1, 1, 2], [0], [0]>} : vector<4x8x32xf32>, vector<4x32x8xf32>, vector<4x8x8xf32> -> vector<4x8x8xf32>
      "tpu.trace_stop"() : () -> ()
      %cst_11 = arith.constant 0.353553385 : f32
      %19 = vector.broadcast %cst_11 : f32 to vector<4x8x8xf32>
      %20 = arith.mulf %18, %19 : vector<4x8x8xf32>
      %c0_12 = arith.constant 0 : index
      %c0_13 = arith.constant 0 : index
      %c0_14 = arith.constant 0 : index
      %21 = vector.load %arg10[%c0_12, %c0_13, %c0_14] : memref<4x8x8xf32, #tpu.memory_space<vmem>>, vector<4x8x8xf32>
      tpu.vector_store %arg10[%c0_12, %c0_13, %c0_14], %20 {strides = array<i32>} : memref<4x8x8xf32, #tpu.memory_space<vmem>>, vector<4x8x8xf32>,
      %cst_15 = arith.constant 0xFF800000 : f32
      %22 = vector.broadcast %cst_15 : f32 to vector<4x8x1xf32>
      %c0_16 = arith.constant 0 : index
      %c0_17 = arith.constant 0 : index
      %c0_18 = arith.constant 0 : index
      %23 = vector.load %arg11[%c0_16, %c0_17, %c0_18] : memref<4x8x1xf32, #tpu.memory_space<vmem>>, vector<4x8x1xf32>
      tpu.vector_store %arg11[%c0_16, %c0_17, %c0_18], %22 {strides = array<i32>} : memref<4x8x1xf32, #tpu.memory_space<vmem>>, vector<4x8x1xf32>,
      %cst_19 = arith.constant 0.000000e+00 : f32
      %24 = vector.broadcast %cst_19 : f32 to vector<4x8x1xf32>
      %c0_20 = arith.constant 0 : index
      %c0_21 = arith.constant 0 : index
      %c0_22 = arith.constant 0 : index
      %25 = vector.load %arg12[%c0_20, %c0_21, %c0_22] : memref<4x8x1xf32, #tpu.memory_space<vmem>>, vector<4x8x1xf32>
      tpu.vector_store %arg12[%c0_20, %c0_21, %c0_22], %24 {strides = array<i32>} : memref<4x8x1xf32, #tpu.memory_space<vmem>>, vector<4x8x1xf32>,
      %cst_23 = arith.constant 0.000000e+00 : f32
      %26 = vector.broadcast %cst_23 : f32 to vector<4x8x8xf32>
      %c0_24 = arith.constant 0 : index
      %c0_25 = arith.constant 0 : index
      %c0_26 = arith.constant 0 : index
      %27 = vector.load %arg13[%c0_24, %c0_25, %c0_26] : memref<4x8x8xf32, #tpu.memory_space<vmem>>, vector<4x8x8xf32>
      tpu.vector_store %arg13[%c0_24, %c0_25, %c0_26], %26 {strides = array<i32>} : memref<4x8x8xf32, #tpu.memory_space<vmem>>, vector<4x8x8xf32>,
    } else {
    }
    %c8_i32_2 = arith.constant 8 : i32
    %5 = arith.addi %0, %c8_i32_2 : i32
    %c1_i32 = arith.constant 1 : i32
    %6 = arith.subi %5, %c1_i32 : i32
    %7 = arith.cmpi sle, %1, %6 : i32
    %8 = arith.extui %7 : i1 to i32
    %c0_i32_3 = arith.constant 0 : i32
    %9 = arith.cmpi ne, %8, %c0_i32_3 : i32
    scf.if %9 {
      %c0 = arith.constant 0 : index
      %c0_6 = arith.constant 0 : index
      %c0_7 = arith.constant 0 : index
      %13 = vector.load %arg4[%c0, %c0_6, %c0_7] : memref<1x8x32xf32, #tpu.memory_space<vmem>>, vector<1x8x32xf32>
      %14 = vector.shape_cast %13 : vector<1x8x32xf32> to vector<8x32xf32>
      %15 = vector.shape_cast %14 : vector<8x32xf32> to vector<1x8x32xf32>
      %16 = vector.broadcast %15 : vector<1x8x32xf32> to vector<4x8x32xf32>
      %c0_8 = arith.constant 0 : index
      %c0_9 = arith.constant 0 : index
      %c0_10 = arith.constant 0 : index
      %17 = vector.load %arg6[%c0_8, %c0_9, %c0_10] : memref<4x32x8xf32, #tpu.memory_space<vmem>>, vector<4x32x8xf32>
      "tpu.trace_start"() <{level = 10 : i32, message = "hsd,hdk->hsk"}> : () -> ()
      %cst = arith.constant dense<0.000000e+00> : vector<4x8x8xf32>
      %18 = tpu.matmul %16, %17, %cst {dimension_numbers = #tpu.dot_dimension_numbers<[2], [1], [1], [2], [0, 0, 0, 1, 1, 2], [0], [0]>} : vector<4x8x32xf32>, vector<4x32x8xf32>, vector<4x8x8xf32> -> vector<4x8x8xf32>
      "tpu.trace_stop"() : () -> ()
      %c0_11 = arith.constant 0 : index
      %c0_12 = arith.constant 0 : index
      %c0_13 = arith.constant 0 : index
      %19 = vector.load %arg7[%c0_11, %c0_12, %c0_13] : memref<4x32x8xf32, #tpu.memory_space<vmem>>, vector<4x32x8xf32>
      "tpu.trace_start"() <{level = 10 : i32, message = "hsd,hdk->hsk"}> : () -> ()
      %cst_14 = arith.constant dense<0.000000e+00> : vector<4x8x8xf32>
      %20 = tpu.matmul %16, %19, %cst_14 {dimension_numbers = #tpu.dot_dimension_numbers<[2], [1], [1], [2], [0, 0, 0, 1, 1, 2], [0], [0]>} : vector<4x8x32xf32>, vector<4x32x8xf32>, vector<4x8x8xf32> -> vector<4x8x8xf32>
      "tpu.trace_stop"() : () -> ()
      %c0_15 = arith.constant 0 : index
      %c0_16 = arith.constant 0 : index
      %c0_17 = arith.constant 0 : index
      %21 = vector.load %arg10[%c0_15, %c0_16, %c0_17] : memref<4x8x8xf32, #tpu.memory_space<vmem>>, vector<4x8x8xf32>
      "tpu.trace_start"() <{level = 10 : i32, message = "hqk,hsk->hqs"}> : () -> ()
      %cst_18 = arith.constant dense<0.000000e+00> : vector<4x8x8xf32>
      %22 = tpu.matmul %21, %18, %cst_18 {dimension_numbers = #tpu.dot_dimension_numbers<[2], [2], [1], [1], [0, 0, 0, 1, 1, 1], [0], [0]>} : vector<4x8x8xf32>, vector<4x8x8xf32>, vector<4x8x8xf32> -> vector<4x8x8xf32>
      "tpu.trace_stop"() : () -> ()
      %23 = tpu.iota {dimensions = array<i32: 0>} : vector<8x8xi32>
      %24 = vector.broadcast %0 : i32 to vector<8x8xi32>
      %25 = arith.addi %24, %23 : vector<8x8xi32>
      %26 = tpu.iota {dimensions = array<i32: 1>} : vector<8x8xi32>
      %27 = vector.broadcast %1 : i32 to vector<8x8xi32>
      %28 = arith.addi %27, %26 : vector<8x8xi32>
      %29 = arith.cmpi sle, %28, %25 : vector<8x8xi32>
      %30 = vector.shape_cast %29 : vector<8x8xi1> to vector<1x8x8xi1>
      %cst_19 = arith.constant 0xFF800000 : f32
      %31 = vector.shape_cast %30 : vector<1x8x8xi1> to vector<1x8x8xi1>
      %32 = vector.broadcast %31 : vector<1x8x8xi1> to vector<4x8x8xi1>
      %33 = vector.broadcast %cst_19 : f32 to vector<4x8x8xf32>
      %34 = arith.select %32, %22, %33 : vector<4x8x8xi1>, vector<4x8x8xf32>
      %c0_20 = arith.constant 0 : index
      %c0_21 = arith.constant 0 : index
      %c0_22 = arith.constant 0 : index
      %35 = vector.load %arg11[%c0_20, %c0_21, %c0_22] : memref<4x8x1xf32, #tpu.memory_space<vmem>>, vector<4x8x1xf32>
      %cst_23 = arith.constant dense<0xFF800000> : vector<4x8xf32>
      %36 = vector.multi_reduction <maximumf>, %34, %cst_23 [2] : vector<4x8x8xf32> to vector<4x8xf32>
      %37 = vector.shape_cast %36 : vector<4x8xf32> to vector<4x8x1xf32>
      %38 = arith.maximumf %35, %37 : vector<4x8x1xf32>
      %39 = arith.subf %35, %38 : vector<4x8x1xf32>
      %40 = math.exp %39 : vector<4x8x1xf32>
      %41 = vector.broadcast %38 : vector<4x8x1xf32> to vector<4x8x8xf32>
      %42 = arith.subf %34, %41 : vector<4x8x8xf32>
      %43 = math.exp %42 : vector<4x8x8xf32>
      %c0_24 = arith.constant 0 : index
      %c0_25 = arith.constant 0 : index
      %c0_26 = arith.constant 0 : index
      %44 = vector.load %arg12[%c0_24, %c0_25, %c0_26] : memref<4x8x1xf32, #tpu.memory_space<vmem>>, vector<4x8x1xf32>
      %45 = arith.mulf %40, %44 : vector<4x8x1xf32>
      %cst_27 = arith.constant dense<0.000000e+00> : vector<4x8xf32>
      %46 = vector.multi_reduction <add>, %43, %cst_27 [2] : vector<4x8x8xf32> to vector<4x8xf32>
      %47 = vector.shape_cast %46 : vector<4x8xf32> to vector<4x8x1xf32>
      %48 = arith.addf %45, %47 : vector<4x8x1xf32>
      %c0_28 = arith.constant 0 : index
      %c0_29 = arith.constant 0 : index
      %c0_30 = arith.constant 0 : index
      %49 = vector.load %arg12[%c0_28, %c0_29, %c0_30] : memref<4x8x1xf32, #tpu.memory_space<vmem>>, vector<4x8x1xf32>
      tpu.vector_store %arg12[%c0_28, %c0_29, %c0_30], %48 {strides = array<i32>} : memref<4x8x1xf32, #tpu.memory_space<vmem>>, vector<4x8x1xf32>,
      %c0_31 = arith.constant 0 : index
      %c0_32 = arith.constant 0 : index
      %c0_33 = arith.constant 0 : index
      %50 = vector.load %arg13[%c0_31, %c0_32, %c0_33] : memref<4x8x8xf32, #tpu.memory_space<vmem>>, vector<4x8x8xf32>
      %51 = vector.broadcast %40 : vector<4x8x1xf32> to vector<4x8x8xf32>
      %52 = arith.mulf %51, %50 : vector<4x8x8xf32>
      "tpu.trace_start"() <{level = 10 : i32, message = "hqs,hsk->hqk"}> : () -> ()
      %cst_34 = arith.constant dense<0.000000e+00> : vector<4x8x8xf32>
      %53 = tpu.matmul %43, %20, %cst_34 {dimension_numbers = #tpu.dot_dimension_numbers<[2], [1], [1], [2], [0, 0, 0, 1, 1, 2], [0], [0]>} : vector<4x8x8xf32>, vector<4x8x8xf32>, vector<4x8x8xf32> -> vector<4x8x8xf32>
      "tpu.trace_stop"() : () -> ()
      %54 = arith.addf %52, %53 : vector<4x8x8xf32>
      %c0_35 = arith.constant 0 : index
      %c0_36 = arith.constant 0 : index
      %c0_37 = arith.constant 0 : index
      %55 = vector.load %arg13[%c0_35, %c0_36, %c0_37] : memref<4x8x8xf32, #tpu.memory_space<vmem>>, vector<4x8x8xf32>
      tpu.vector_store %arg13[%c0_35, %c0_36, %c0_37], %54 {strides = array<i32>} : memref<4x8x8xf32, #tpu.memory_space<vmem>>, vector<4x8x8xf32>,
      %c0_38 = arith.constant 0 : index
      %c0_39 = arith.constant 0 : index
      %c0_40 = arith.constant 0 : index
      %56 = vector.load %arg11[%c0_38, %c0_39, %c0_40] : memref<4x8x1xf32, #tpu.memory_space<vmem>>, vector<4x8x1xf32>
      tpu.vector_store %arg11[%c0_38, %c0_39, %c0_40], %38 {strides = array<i32>} : memref<4x8x1xf32, #tpu.memory_space<vmem>>, vector<4x8x1xf32>,
    } else {
    }
    %c0_i32_4 = arith.constant 0 : i32
    %10 = arith.cmpi eq, %arg2, %c0_i32_4 : i32
    %11 = arith.extui %10 : i1 to i32
    %c0_i32_5 = arith.constant 0 : i32
    %12 = arith.cmpi ne, %11, %c0_i32_5 : i32
    scf.if %12 {
      %c0 = arith.constant 0 : index
      %c0_6 = arith.constant 0 : index
      %c0_7 = arith.constant 0 : index
      %13 = vector.load %arg13[%c0, %c0_6, %c0_7] : memref<4x8x8xf32, #tpu.memory_space<vmem>>, vector<4x8x8xf32>
      %c0_8 = arith.constant 0 : index
      %c0_9 = arith.constant 0 : index
      %c0_10 = arith.constant 0 : index
      %14 = vector.load %arg12[%c0_8, %c0_9, %c0_10] : memref<4x8x1xf32, #tpu.memory_space<vmem>>, vector<4x8x1xf32>
      %15 = tpu.reciprocal %14 {approx = true} : vector<4x8x1xf32> -> vector<4x8x1xf32>
      %16 = vector.broadcast %15 : vector<4x8x1xf32> to vector<4x8x8xf32>
      %17 = arith.mulf %13, %16 : vector<4x8x8xf32>
      %c0_11 = arith.constant 0 : index
      %c0_12 = arith.constant 0 : index
      %c0_13 = arith.constant 0 : index
      %18 = vector.load %arg8[%c0_11, %c0_12, %c0_13] : memref<4x8x32xf32, #tpu.memory_space<vmem>>, vector<4x8x32xf32>
      "tpu.trace_start"() <{level = 10 : i32, message = "hqk,hkd->hqd"}> : () -> ()
      %cst = arith.constant dense<0.000000e+00> : vector<4x8x32xf32>
      %19 = tpu.matmul %17, %18, %cst {dimension_numbers = #tpu.dot_dimension_numbers<[2], [1], [1], [2], [0, 0, 0, 1, 1, 2], [0], [0]>} : vector<4x8x8xf32>, vector<4x8x32xf32>, vector<4x8x32xf32> -> vector<4x8x32xf32>
      "tpu.trace_stop"() : () -> ()
      %cst_14 = arith.constant dense<0.000000e+00> : vector<8x32xf32>
      %20 = vector.multi_reduction <add>, %19, %cst_14 [0] : vector<4x8x32xf32> to vector<8x32xf32>
      %c0_15 = arith.constant 0 : index
      %c0_16 = arith.constant 0 : index
      %c0_17 = arith.constant 0 : index
      %21 = vector.load %arg9[%c0_15, %c0_16, %c0_17] : memref<1x8x32xf32, #tpu.memory_space<vmem>>, vector<1x8x32xf32>
      %22 = vector.shape_cast %21 : vector<1x8x32xf32> to vector<8x32xf32>
      %23 = vector.shape_cast %20 : vector<8x32xf32> to vector<1x8x32xf32>
      tpu.vector_store %arg9[%c0_15, %c0_16, %c0_17], %23 {strides = array<i32>} : memref<1x8x32xf32, #tpu.memory_space<vmem>>, vector<1x8x32xf32>,
    } else {
    }
    return
  }
  func.func @transform_0(%arg0: i32, %arg1: i32, %arg2: i32) -> (i32, i32, i32) {
    %c0_i32 = arith.constant 0 : i32
    %c0_i32_0 = arith.constant 0 : i32
    return %arg0, %arg1, %c0_i32 : i32, i32, i32
  }
  func.func @transform_1(%arg0: i32, %arg1: i32, %arg2: i32) -> (i32, i32, i32) {
    %c0_i32 = arith.constant 0 : i32
    %c0_i32_0 = arith.constant 0 : i32
    return %arg0, %arg2, %c0_i32 : i32, i32, i32
  }
  func.func @transform_2(%arg0: i32, %arg1: i32, %arg2: i32) -> (i32, i32, i32) {
    %c0_i32 = arith.constant 0 : i32
    %c0_i32_0 = arith.constant 0 : i32
    %c0_i32_1 = arith.constant 0 : i32
    %c0_i32_2 = arith.constant 0 : i32
    return %c0_i32, %c0_i32_0, %c0_i32_1 : i32, i32, i32
  }
  func.func @transform_3(%arg0: i32, %arg1: i32, %arg2: i32) -> (i32, i32, i32) {
    %c0_i32 = arith.constant 0 : i32
    %c0_i32_0 = arith.constant 0 : i32
    %c0_i32_1 = arith.constant 0 : i32
    %c0_i32_2 = arith.constant 0 : i32
    return %c0_i32, %c0_i32_0, %c0_i32_1 : i32, i32, i32
  }
  func.func @transform_4(%arg0: i32, %arg1: i32, %arg2: i32) -> (i32, i32, i32) {
    %c0_i32 = arith.constant 0 : i32
    %c0_i32_0 = arith.constant 0 : i32
    %c0_i32_1 = arith.constant 0 : i32
    %c0_i32_2 = arith.constant 0 : i32
    return %c0_i32, %c0_i32_0, %c0_i32_1 : i32, i32, i32
  }
  func.func @transform_5(%arg0: i32, %arg1: i32, %arg2: i32) -> (i32, i32, i32) {
    %c0_i32 = arith.constant 0 : i32
    %c0_i32_0 = arith.constant 0 : i32
    %c0_i32_1 = arith.constant 0 : i32
    %c0_i32_2 = arith.constant 0 : i32
    return %c0_i32, %c0_i32_0, %c0_i32_1 : i32, i32, i32
  }
  func.func @transform_6(%arg0: i32, %arg1: i32, %arg2: i32) -> (i32, i32, i32) {
    %c0_i32 = arith.constant 0 : i32
    %c0_i32_0 = arith.constant 0 : i32
    return %arg0, %arg1, %c0_i32 : i32, i32, i32
  }
}

</mosaic_0001>

<llo_original>
// kernel: tpu_custom_call.1
$region0: #{tpu_custom_call.1}
  #allocation0 [shape = 'u32[]', space=smem, size = 0x4, offset = 0x4, fixed_abs, tag = 'smem constant byte address 0x4 - core index']
  #allocation1 [shape = 'u32[144,128]{1,0:T(1,128)}', space=vmem, size = 0x12000, scoped, tag = 'internal scratch']
  #allocation2 [shape = 'f32[4,8,8]{2,1,0:T(8,128)}', space=vmem, size = 0x4000, scoped, tag = 'scratch operand']
  #allocation3 [shape = 'f32[4,8,1]{2,1,0:T(8,128)}', space=vmem, size = 0x4000, scoped, tag = 'scratch operand']
  #allocation4 [shape = 'f32[4,8,1]{2,1,0:T(8,128)}', space=vmem, size = 0x4000, scoped, tag = 'scratch operand']
  #allocation5 [shape = 'f32[4,8,8]{2,1,0:T(8,128)}', space=vmem, size = 0x4000, scoped, tag = 'scratch operand']
  %s0 = inlined_call_operand.vmem [shape: f32[2,8,32], index: 0, kind: input, shape index: {}]
  %s1 = inlined_call_operand.vmem [shape: f32[2,8,32], index: 1, kind: input, shape index: {}]
  %s2 = inlined_call_operand.vmem [shape: f32[4,32,8], index: 2, kind: input, shape index: {}]
  %s3 = inlined_call_operand.vmem [shape: f32[4,32,8], index: 3, kind: input, shape index: {}]
  %s4 = inlined_call_operand.vmem [shape: f32[4,32,8], index: 4, kind: input, shape index: {}]
  %s5 = inlined_call_operand.vmem [shape: f32[4,8,32], index: 5, kind: input, shape index: {}]
  %s6 = inlined_call_operand.hbm [shape: f32[2,8,32], index: 6, kind: output, shape index: {}]
  %s7 = sld [smem:[#allocation0]]
  $region69: #{tpu_custom_call.1} parent=0
    _
  %s9 = ssub.s32 1, %s7
  %s10 = scalar_select 0, %s9, %s7
  $region1: #{tpu_custom_call.1} parent=0
    #allocation6 [shape = 'u8[8192]{0}', space=vmem, size = 0x2000, scoped, tag = 'output window, operand 0']
    #allocation7 [shape = 's32[2]{0}', space=sflag, size = 0x8, scoped, tag = 'scoped memory for tpu_custom_call.1']
    %11 = vsyncpa [#allocation7], 0
    %s12 = scalar_lea.sflag [#allocation7], 1
    %13 = vsyncpa %s12, 0
    loop: start=0, step=1, limit=4
    $region2: #{tpu_custom_call.1} parent=1 // loop_pre_header
      _
    $region3: #{tpu_custom_call.1} parent=1 // loop_header
      %s15 = sphi 0, %s19
      %p16 = scmp.ge.s32.totalorder %s15, 4
      %s22 = sphi 0, %s41
      %s23 = sphi 0, %s37
      %s24 = sphi 0, %s33
      %s25 = sphi 0, %s22
      %s26 = sphi 0, %s23
      %s27 = sphi 0, %s24
      %s28 = sphi 0, %s25
      %s29 = sphi 0, %s26
      %s30 = sphi 0, %s27
      %s46 = sphi 0, %s48
      %s49 = sphi 0, %s46
      %s50 = sphi 0, %s49
      %s66 = sphi 0, %s50
      %s74 = sphi 0, %s76
      %s77 = sphi 0, %s74
      %s78 = sphi 0, %s77
      %s94 = sphi 0, %s78
      %s98 = sphi 0, %s98
      %s100 = sphi 0, %s98
      %s101 = sphi 0, %s100
      %s115 = sphi 0, %s101
      %s119 = sphi 0, %s119
      %s121 = sphi 0, %s119
      %s122 = sphi 0, %s121
      %s136 = sphi 0, %s122
      %s140 = sphi 0, %s140
      %s142 = sphi 0, %s140
      %s143 = sphi 0, %s142
      %s157 = sphi 0, %s143
      %s161 = sphi 0, %s161
      %s163 = sphi 0, %s161
      %s164 = sphi 0, %s163
      %s178 = sphi 0, %s164
      %s186 = sphi 0, %s188
      %s189 = sphi 0, %s186
      %s190 = sphi 0, %s189
      %s206 = sphi 0, %s190
    $region4: #{tpu_custom_call.1} parent=1 // loop_header_branch
      %18 = sbr.rel (%p16) target = $region8
    $region5: #{tpu_custom_call.1} parent=1 // loop_body
      %s20 = ssub.s32 %s15, 1
      %s21 = ssub.s32 %s15, 2
      %s31 = sadd.s32 1, %s24
      %p32 = scmp.ge.s32.totalorder %s31, 1
      %s33 = scalar_select %p32, 0, %s31
      %s34 = sadd.s32 1, %s23
      %s35 = scalar_select %p32, %s34, %s23
      %p36 = scmp.ge.s32.totalorder %s35, 1
      %s37 = scalar_select %p36, 0, %s35
      %s38 = sadd.s32 1, %s22
      %s39 = scalar_select %p36, %s38, %s22
      %p40 = scmp.ge.s32.totalorder %s39, 2
      %s41 = scalar_select %p40, 0, %s39
      %s42 = ssub.s32 %s22, %s41
      %s43 = ssub.s32 %s23, %s37
      %s44 = sor.u32 %s42, %s43
      %p45 = scmp.eq.s32.totalorder %s44, 0
      %s47 = sadd.s32 %s46, 1
      %s48 = scalar_select %p45, %s46, %s47
      %p51 = pneg %p45
      %p52 = scmp.eq.s32.totalorder %s15, 1
      %p53 = por %p51, %p52
      %p54 = scmp.ne.s32.totalorder %s46, %s49
      %p55 = scmp.eq.s32.totalorder %s15, 0
      %p56 = por %p54, %p55
      %p57 = scmp.ne.s32.totalorder %s46, %s49
      %p58 = scmp.eq.s32.totalorder %s20, 1
      %p59 = por %p57, %p58
      %p60 = scmp.ne.s32.totalorder %s49, %s50
      %p61 = scmp.eq.s32.totalorder %s20, 0
      %p62 = por %p60, %p61
      %p63 = scmp.ne.s32.totalorder %s49, %s50
      %p64 = scmp.eq.s32.totalorder %s21, 1
      %p65 = por %p63, %p64
      %p67 = scmp.ne.s32.totalorder %s50, %s66
      %p68 = scmp.eq.s32.totalorder %s21, 0
      %p69 = por %p67, %p68
      %s70 = ssub.s32 %s22, %s41
      %s71 = ssub.s32 %s24, %s33
      %s72 = sor.u32 %s70, %s71
      %p73 = scmp.eq.s32.totalorder %s72, 0
      %s75 = sadd.s32 %s74, 1
      %s76 = scalar_select %p73, %s74, %s75
      %p79 = pneg %p73
      %p80 = scmp.eq.s32.totalorder %s15, 1
      %p81 = por %p79, %p80
      %p82 = scmp.ne.s32.totalorder %s74, %s77
      %p83 = scmp.eq.s32.totalorder %s15, 0
      %p84 = por %p82, %p83
      %p85 = scmp.ne.s32.totalorder %s74, %s77
      %p86 = scmp.eq.s32.totalorder %s20, 1
      %p87 = por %p85, %p86
      %p88 = scmp.ne.s32.totalorder %s77, %s78
      %p89 = scmp.eq.s32.totalorder %s20, 0
      %p90 = por %p88, %p89
      %p91 = scmp.ne.s32.totalorder %s77, %s78
      %p92 = scmp.eq.s32.totalorder %s21, 1
      %p93 = por %p91, %p92
      %p95 = scmp.ne.s32.totalorder %s78, %s94
      %p96 = scmp.eq.s32.totalorder %s21, 0
      %p97 = por %p95, %p96
      %s99 = sadd.s32 %s98, 1
      %p102 = scmp.eq.s32.totalorder %s15, 1
      %p103 = scmp.ne.s32.totalorder %s98, %s100
      %p104 = scmp.eq.s32.totalorder %s15, 0
      %p105 = por %p103, %p104
      %p106 = scmp.ne.s32.totalorder %s98, %s100
      %p107 = scmp.eq.s32.totalorder %s20, 1
      %p108 = por %p106, %p107
      %p109 = scmp.ne.s32.totalorder %s100, %s101
      %p110 = scmp.eq.s32.totalorder %s20, 0
      %p111 = por %p109, %p110
      %p112 = scmp.ne.s32.totalorder %s100, %s101
      %p113 = scmp.eq.s32.totalorder %s21, 1
      %p114 = por %p112, %p113
      %p116 = scmp.ne.s32.totalorder %s101, %s115
      %p117 = scmp.eq.s32.totalorder %s21, 0
      %p118 = por %p116, %p117
      %s120 = sadd.s32 %s119, 1
      %p123 = scmp.eq.s32.totalorder %s15, 1
      %p124 = scmp.ne.s32.totalorder %s119, %s121
      %p125 = scmp.eq.s32.totalorder %s15, 0
      %p126 = por %p124, %p125
      %p127 = scmp.ne.s32.totalorder %s119, %s121
      %p128 = scmp.eq.s32.totalorder %s20, 1
      %p129 = por %p127, %p128
      %p130 = scmp.ne.s32.totalorder %s121, %s122
      %p131 = scmp.eq.s32.totalorder %s20, 0
      %p132 = por %p130, %p131
      %p133 = scmp.ne.s32.totalorder %s121, %s122
      %p134 = scmp.eq.s32.totalorder %s21, 1
      %p135 = por %p133, %p134
      %p137 = scmp.ne.s32.totalorder %s122, %s136
      %p138 = scmp.eq.s32.totalorder %s21, 0
      %p139 = por %p137, %p138
      %s141 = sadd.s32 %s140, 1
      %p144 = scmp.eq.s32.totalorder %s15, 1
      %p145 = scmp.ne.s32.totalorder %s140, %s142
      %p146 = scmp.eq.s32.totalorder %s15, 0
      %p147 = por %p145, %p146
      %p148 = scmp.ne.s32.totalorder %s140, %s142
      %p149 = scmp.eq.s32.totalorder %s20, 1
      %p150 = por %p148, %p149
      %p151 = scmp.ne.s32.totalorder %s142, %s143
      %p152 = scmp.eq.s32.totalorder %s20, 0
      %p153 = por %p151, %p152
      %p154 = scmp.ne.s32.totalorder %s142, %s143
      %p155 = scmp.eq.s32.totalorder %s21, 1
      %p156 = por %p154, %p155
      %p158 = scmp.ne.s32.totalorder %s143, %s157
      %p159 = scmp.eq.s32.totalorder %s21, 0
      %p160 = por %p158, %p159
      %s162 = sadd.s32 %s161, 1
      %p165 = scmp.eq.s32.totalorder %s15, 1
      %p166 = scmp.ne.s32.totalorder %s161, %s163
      %p167 = scmp.eq.s32.totalorder %s15, 0
      %p168 = por %p166, %p167
      %p169 = scmp.ne.s32.totalorder %s161, %s163
      %p170 = scmp.eq.s32.totalorder %s20, 1
      %p171 = por %p169, %p170
      %p172 = scmp.ne.s32.totalorder %s163, %s164
      %p173 = scmp.eq.s32.totalorder %s20, 0
      %p174 = por %p172, %p173
      %p175 = scmp.ne.s32.totalorder %s163, %s164
      %p176 = scmp.eq.s32.totalorder %s21, 1
      %p177 = por %p175, %p176
      %p179 = scmp.ne.s32.totalorder %s164, %s178
      %p180 = scmp.eq.s32.totalorder %s21, 0
      %p181 = por %p179, %p180
      %s182 = ssub.s32 %s22, %s41
      %s183 = ssub.s32 %s23, %s37
      %s184 = sor.u32 %s182, %s183
      %p185 = scmp.eq.s32.totalorder %s184, 0
      %s187 = sadd.s32 %s186, 1
      %s188 = scalar_select %p185, %s186, %s187
      %p191 = pneg %p185
      %p192 = scmp.eq.s32.totalorder %s15, 1
      %p193 = por %p191, %p192
      %p194 = scmp.ne.s32.totalorder %s186, %s189
      %p195 = scmp.eq.s32.totalorder %s15, 0
      %p196 = por %p194, %p195
      %p197 = scmp.ne.s32.totalorder %s186, %s189
      %p198 = scmp.eq.s32.totalorder %s20, 1
      %p199 = por %p197, %p198
      %p200 = scmp.ne.s32.totalorder %s189, %s190
      %p201 = scmp.eq.s32.totalorder %s20, 0
      %p202 = por %p200, %p201
      %p203 = scmp.ne.s32.totalorder %s189, %s190
      %p204 = scmp.eq.s32.totalorder %s21, 1
      %p205 = por %p203, %p204
      %p207 = scmp.ne.s32.totalorder %s190, %s206
      %p208 = scmp.eq.s32.totalorder %s21, 0
      %p209 = por %p207, %p208
      %p210 = scmp.le.s32.totalorder 1, %s15
      %p211 = scmp.lt.s32.totalorder %s15, 3
      %p212 = pnand %p210, %p211
      %p213 = pneg %p212
      // Predicated region
      $region9: #{tpu_custom_call.1} parent=5 // pred_check
        _
      $region10: #{tpu_custom_call.1} parent=5 // pred_check_branch
        %215 = sbr.rel (%p212) target = $region12
      $region11: #{tpu_custom_call.1} parent=5 // pred_region
        %s216 = ssub.s32 %s15, 1
        // Predicated region
        $region13: #{tpu_custom_call.1} parent=11 // pred_check
          %p217 = pneg %p111
        $region14: #{tpu_custom_call.1} parent=11 // pred_check_branch
          %219 = sbr.rel (%p217) target = $region16
        $region15: #{tpu_custom_call.1} parent=11 // pred_region
          _
        $region16: #{tpu_custom_call.1} parent=11 // pred_fallthru
          _
        // Predicated region
        $region17: #{tpu_custom_call.1} parent=11 // pred_check
          %p220 = pneg %p132
        $region18: #{tpu_custom_call.1} parent=11 // pred_check_branch
          %222 = sbr.rel (%p220) target = $region20
        $region19: #{tpu_custom_call.1} parent=11 // pred_region
          _
        $region20: #{tpu_custom_call.1} parent=11 // pred_fallthru
          _
        // Predicated region
        $region21: #{tpu_custom_call.1} parent=11 // pred_check
          %p223 = pneg %p153
        $region22: #{tpu_custom_call.1} parent=11 // pred_check_branch
          %225 = sbr.rel (%p223) target = $region24
        $region23: #{tpu_custom_call.1} parent=11 // pred_region
          _
        $region24: #{tpu_custom_call.1} parent=11 // pred_fallthru
          _
        // Predicated region
        $region25: #{tpu_custom_call.1} parent=11 // pred_check
          %p226 = pneg %p174
        $region26: #{tpu_custom_call.1} parent=11 // pred_check_branch
          %228 = sbr.rel (%p226) target = $region28
        $region27: #{tpu_custom_call.1} parent=11 // pred_region
          _
        $region28: #{tpu_custom_call.1} parent=11 // pred_fallthru
          _
      $region12: #{tpu_custom_call.1} parent=5 // pred_fallthru
        _
      %p229 = scmp.lt.s32.totalorder %s15, 2
      // Predicated region
      $region29: #{tpu_custom_call.1} parent=5 // pred_check
        %p230 = pneg %p229
      $region30: #{tpu_custom_call.1} parent=5 // pred_check_branch
        %232 = sbr.rel (%p230) target = $region32
      $region31: #{tpu_custom_call.1} parent=5 // pred_region
        // Predicated region
        $region33: #{tpu_custom_call.1} parent=31 // pred_check
          %p233 = pneg %p56
        $region34: #{tpu_custom_call.1} parent=31 // pred_check_branch
          %235 = sbr.rel (%p233) target = $region36
        $region35: #{tpu_custom_call.1} parent=31 // pred_region
          %p236 = scmp.lt.s32.totalorder %s22, 1
          %s237 = scalar_select %p236, %s22, 1
          %p238 = scmp.lt.s32.totalorder %s23, 0
          %s239 = scalar_select %p238, %s23, 0
          %s240 = sadd.s32 %s239, %s237
          %s241 = smul.addr %s240, 8
          %s242 = scalar_lea.vmem %s0, %s241
        $region36: #{tpu_custom_call.1} parent=31 // pred_fallthru
          _
        // Predicated region
        $region37: #{tpu_custom_call.1} parent=31 // pred_check
          %p243 = pneg %p84
        $region38: #{tpu_custom_call.1} parent=31 // pred_check_branch
          %245 = sbr.rel (%p243) target = $region40
        $region39: #{tpu_custom_call.1} parent=31 // pred_region
          %p246 = scmp.lt.s32.totalorder %s22, 1
          %s247 = scalar_select %p246, %s22, 1
          %p248 = scmp.lt.s32.totalorder %s24, 0
          %s249 = scalar_select %p248, %s24, 0
          %s250 = sadd.s32 %s249, %s247
          %s251 = smul.addr %s250, 8
          %s252 = scalar_lea.vmem %s1, %s251
        $region40: #{tpu_custom_call.1} parent=31 // pred_fallthru
          _
      $region32: #{tpu_custom_call.1} parent=5 // pred_fallthru
        _
      %p253 = scmp.le.s32.totalorder 1, %s15
      %p254 = scmp.lt.s32.totalorder %s15, 3
      %p255 = pnand %p253, %p254
      %p256 = pneg %p255
      // Predicated region
      $region41: #{tpu_custom_call.1} parent=5 // pred_check
        _
      $region42: #{tpu_custom_call.1} parent=5 // pred_check_branch
        %258 = sbr.rel (%p255) target = $region44
      $region43: #{tpu_custom_call.1} parent=5 // pred_region
        %s259 = ssub.s32 %s15, 1
        %p260 = scmp.lt.s32.totalorder %s25, 1
        %s261 = scalar_select %p260, %s25, 1
        %p262 = scmp.lt.s32.totalorder %s26, 0
        %s263 = scalar_select %p262, %s26, 0
        %s264 = sadd.s32 %s263, %s261
        %s265 = smul.addr %s264, 8
        %s266 = scalar_lea.vmem %s0, %s265
        %p267 = pneg %p62
        %p268 = pneg %p59
        %p269 = scmp.lt.s32.totalorder %s25, 1
        %s270 = scalar_select %p269, %s25, 1
        %p271 = scmp.lt.s32.totalorder %s27, 0
        %s272 = scalar_select %p271, %s27, 0
        %s273 = sadd.s32 %s272, %s270
        %s274 = smul.addr %s273, 8
        %s275 = scalar_lea.vmem %s1, %s274
        %p276 = pneg %p90
        %p277 = pneg %p87
        %p278 = pneg %p111
        %p279 = pneg %p108
        %p280 = pneg %p132
        %p281 = pneg %p129
        %p282 = pneg %p153
        %p283 = pneg %p150
        %p284 = pneg %p174
        %p285 = pneg %p171
        %p286 = pneg %p202
        %p287 = pneg %p199
        %s288 = sand.u32 %s189, 1
        %s289 = scalar_lea.sflag [#allocation7], %s288
        %s290 = sand.u32 %s189, 1
        %s291 = smul.addr %s290, 8
        %s292 = scalar_lea.vmem [#allocation6], %s291
        %p293 = scmp.lt.s32.totalorder %s25, 1
        %s294 = scalar_select %p293, %s25, 1
        %p295 = scmp.lt.s32.totalorder %s26, 0
        %s296 = scalar_select %p295, %s26, 0
        %s297 = sadd.s32 %s296, %s294
        %s298 = smul.addr %s297, 8
        %s299 = scalar_lea.vmem %s0, %s298
        %p300 = scmp.lt.s32.totalorder %s25, 1
        %s301 = scalar_select %p300, %s25, 1
        %p302 = scmp.lt.s32.totalorder %s27, 0
        %s303 = scalar_select %p302, %s27, 0
        %s304 = sadd.s32 %s303, %s301
        %s305 = smul.addr %s304, 8
        %s306 = scalar_lea.vmem %s1, %s305
        %s307 = smul.u32 %s26, 8
        %s308 = smul.u32 %s27, 8
        %p309 = scmp.eq.s32.totalorder %s27, 0
        // Predicated region
        $region45: #{tpu_custom_call.1} parent=43 // pred_check
          %p310 = pneg %p309
        $region46: #{tpu_custom_call.1} parent=43 // pred_check_branch
          %312 = sbr.rel (%p310) target = $region48
        $region47: #{tpu_custom_call.1} parent=43 // pred_region
          %v313 = vld [vmem:[%s299] sm:$0xff]
          %v314 = vld [vmem:[%s2] sm:$0xff]
          %v315 = vld [vmem:[%s2 + $0x8] sm:$0xff]
          %v316 = vld [vmem:[%s2 + $0x10] sm:$0xff]
          %v317 = vld [vmem:[%s2 + $0x18] sm:$0xff]
          %v318 = vld [vmem:[%s2 + $0x20] sm:$0xff]
          %v319 = vld [vmem:[%s2 + $0x28] sm:$0xff]
          %v320 = vld [vmem:[%s2 + $0x30] sm:$0xff]
          %v321 = vld [vmem:[%s2 + $0x38] sm:$0xff]
          %v322 = vld [vmem:[%s2 + $0x40] sm:$0xff]
          %v323 = vld [vmem:[%s2 + $0x48] sm:$0xff]
          %v324 = vld [vmem:[%s2 + $0x50] sm:$0xff]
          %v325 = vld [vmem:[%s2 + $0x58] sm:$0xff]
          %v326 = vld [vmem:[%s2 + $0x60] sm:$0xff]
          %v327 = vld [vmem:[%s2 + $0x68] sm:$0xff]
          %v328 = vld [vmem:[%s2 + $0x70] sm:$0xff]
          %v329 = vld [vmem:[%s2 + $0x78] sm:$0xff]
          %vm330 = vcmask 261120
          %v332 = vsel %vm330, %v313, 0
          %334 = vmatprep.subr.mxu0 0.0
          %335 = vmatpush1.msra.mxu0 %v314
          %336 = vmatprep.subr.mxu0 0.0
          %337 = vmatpush1.msra.mxu0 %v315
          %338 = vmatprep.subr.mxu0 0.0
          %339 = vmatpush1.msra.mxu0 %v316
          %340 = vmatprep.subr.mxu0 0.0
          %341 = vmatpush1.msra.mxu0 %v317
          %342 = vmatprep.subr.mxu0 0.0
          %343 = vmatpush1.msra.mxu0 0.0
          %344 = vmatprep.subr.mxu0 0.0
          %345 = vmatpush1.msra.mxu0 0.0
          %346 = vmatprep.subr.mxu0 0.0
          %347 = vmatpush1.msra.mxu0 0.0
          %348 = vmatprep.subr.mxu0 0.0
          %349 = vmatpush1.msra.mxu0 0.0
          %350 = vmatprep.subr.mxu0 0.0
          %351 = vmatpush1.msra.mxu0 0.0
          %352 = vmatprep.subr.mxu0 0.0
          %353 = vmatpush1.msra.mxu0 0.0
          %354 = vmatprep.subr.mxu0 0.0
          %355 = vmatpush1.msra.mxu0 0.0
          %356 = vmatprep.subr.mxu0 0.0
          %357 = vmatpush1.msra.mxu0 0.0
          %358 = vmatprep.subr.mxu0 0.0
          %359 = vmatpush1.msra.mxu0 0.0
          %360 = vmatprep.subr.mxu0 0.0
          %361 = vmatpush1.msra.mxu0 0.0
          %362 = vmatprep.subr.mxu0 0.0
          %363 = vmatpush1.msra.mxu0 0.0
          %364 = vmatprep.subr.mxu0 0.0
          %365 = vmatpush1.msra.mxu0 0.0
          %366 = vmatprep.subr.mxu0 0.0
          %367 = vmatpush1.msra.mxu0 0.0
          %368 = vmatprep.subr.mxu0 0.0
          %369 = vmatpush1.msra.mxu0 0.0
          %370 = vmatprep.subr.mxu0 0.0
          %371 = vmatpush1.msra.mxu0 0.0
          %372 = vmatprep.subr.mxu0 0.0
          %373 = vmatpush1.msra.mxu0 0.0
          %374 = vmatprep.subr.mxu0 0.0
          %375 = vmatpush1.msra.mxu0 0.0
          %376 = vmatprep.subr.mxu0 0.0
          %377 = vmatpush1.msra.mxu0 0.0
          %378 = vmatprep.subr.mxu0 0.0
          %379 = vmatpush1.msra.mxu0 0.0
          %380 = vmatprep.subr.mxu0 0.0
          %381 = vmatpush1.msra.mxu0 0.0
          %382 = vmatprep.subr.mxu0 0.0
          %383 = vmatpush1.msra.mxu0 0.0
          %384 = vmatprep.subr.mxu0 0.0
          %385 = vmatpush1.msra.mxu0 0.0
          %386 = vmatprep.subr.mxu0 0.0
          %387 = vmatpush1.msra.mxu0 0.0
          %388 = vmatprep.subr.mxu0 0.0
          %389 = vmatpush1.msra.mxu0 0.0
          %390 = vmatprep.subr.mxu0 0.0
          %391 = vmatpush1.msra.mxu0 0.0
          %392 = vmatprep.subr.mxu0 0.0
          %393 = vmatpush1.msra.mxu0 0.0
          %394 = vmatprep.subr.mxu0 0.0
          %395 = vmatpush1.msra.mxu0 0.0
          %396 = vmatprep.subr.mxu0 0.0
          %397 = vmatpush1.msra.mxu0 0.0
          %398 = vmatprep.mubr.f32.mxu0 0.0
          %399 = vmatmul.mubr.f32.gmra.mrb[0].mxu0 %v332
          %v400 = vpop.f32.mrb[0].mxu0
          %v401 = vadd.f32 0.0, %v400
          %v402 = vpop.f32.mrb[0].mxu0
          %403 = vdwg.mxu0
          %404 = vmatprep.subr.mxu0 0.0
          %405 = vmatpush1.msra.mxu0 %v318
          %406 = vmatprep.subr.mxu0 0.0
          %407 = vmatpush1.msra.mxu0 %v319
          %408 = vmatprep.subr.mxu0 0.0
          %409 = vmatpush1.msra.mxu0 %v320
          %410 = vmatprep.subr.mxu0 0.0
          %411 = vmatpush1.msra.mxu0 %v321
          %412 = vmatprep.subr.mxu0 0.0
          %413 = vmatpush1.msra.mxu0 0.0
          %414 = vmatprep.subr.mxu0 0.0
          %415 = vmatpush1.msra.mxu0 0.0
          %416 = vmatprep.subr.mxu0 0.0
          %417 = vmatpush1.msra.mxu0 0.0
          %418 = vmatprep.subr.mxu0 0.0
          %419 = vmatpush1.msra.mxu0 0.0
          %420 = vmatprep.subr.mxu0 0.0
          %421 = vmatpush1.msra.mxu0 0.0
          %422 = vmatprep.subr.mxu0 0.0
          %423 = vmatpush1.msra.mxu0 0.0
          %424 = vmatprep.subr.mxu0 0.0
          %425 = vmatpush1.msra.mxu0 0.0
          %426 = vmatprep.subr.mxu0 0.0
          %427 = vmatpush1.msra.mxu0 0.0
          %428 = vmatprep.subr.mxu0 0.0
          %429 = vmatpush1.msra.mxu0 0.0
          %430 = vmatprep.subr.mxu0 0.0
          %431 = vmatpush1.msra.mxu0 0.0
          %432 = vmatprep.subr.mxu0 0.0
          %433 = vmatpush1.msra.mxu0 0.0
          %434 = vmatprep.subr.mxu0 0.0
          %435 = vmatpush1.msra.mxu0 0.0
          %436 = vmatprep.subr.mxu0 0.0
          %437 = vmatpush1.msra.mxu0 0.0
          %438 = vmatprep.subr.mxu0 0.0
          %439 = vmatpush1.msra.mxu0 0.0
          %440 = vmatprep.subr.mxu0 0.0
          %441 = vmatpush1.msra.mxu0 0.0
          %442 = vmatprep.subr.mxu0 0.0
          %443 = vmatpush1.msra.mxu0 0.0
          %444 = vmatprep.subr.mxu0 0.0
          %445 = vmatpush1.msra.mxu0 0.0
          %446 = vmatprep.subr.mxu0 0.0
          %447 = vmatpush1.msra.mxu0 0.0
          %448 = vmatprep.subr.mxu0 0.0
          %449 = vmatpush1.msra.mxu0 0.0
          %450 = vmatprep.subr.mxu0 0.0
          %451 = vmatpush1.msra.mxu0 0.0
          %452 = vmatprep.subr.mxu0 0.0
          %453 = vmatpush1.msra.mxu0 0.0
          %454 = vmatprep.subr.mxu0 0.0
          %455 = vmatpush1.msra.mxu0 0.0
          %456 = vmatprep.subr.mxu0 0.0
          %457 = vmatpush1.msra.mxu0 0.0
          %458 = vmatprep.subr.mxu0 0.0
          %459 = vmatpush1.msra.mxu0 0.0
          %460 = vmatprep.subr.mxu0 0.0
          %461 = vmatpush1.msra.mxu0 0.0
          %462 = vmatprep.subr.mxu0 0.0
          %463 = vmatpush1.msra.mxu0 0.0
          %464 = vmatprep.subr.mxu0 0.0
          %465 = vmatpush1.msra.mxu0 0.0
          %466 = vmatprep.subr.mxu0 0.0
          %467 = vmatpush1.msra.mxu0 0.0
          %468 = vmatprep.mubr.f32.mxu0 0.0
          %469 = vmatmul.mubr.f32.gmra.mrb[0].mxu0 %v332
          %v470 = vpop.f32.mrb[0].mxu0
          %v471 = vadd.f32 0.0, %v470
          %v472 = vpop.f32.mrb[0].mxu0
          %473 = vdwg.mxu0
          %474 = vmatprep.subr.mxu0 0.0
          %475 = vmatpush1.msra.mxu0 %v322
          %476 = vmatprep.subr.mxu0 0.0
          %477 = vmatpush1.msra.mxu0 %v323
          %478 = vmatprep.subr.mxu0 0.0
          %479 = vmatpush1.msra.mxu0 %v324
          %480 = vmatprep.subr.mxu0 0.0
          %481 = vmatpush1.msra.mxu0 %v325
          %482 = vmatprep.subr.mxu0 0.0
          %483 = vmatpush1.msra.mxu0 0.0
          %484 = vmatprep.subr.mxu0 0.0
          %485 = vmatpush1.msra.mxu0 0.0
          %486 = vmatprep.subr.mxu0 0.0
          %487 = vmatpush1.msra.mxu0 0.0
          %488 = vmatprep.subr.mxu0 0.0
          %489 = vmatpush1.msra.mxu0 0.0
          %490 = vmatprep.subr.mxu0 0.0
          %491 = vmatpush1.msra.mxu0 0.0
          %492 = vmatprep.subr.mxu0 0.0
          %493 = vmatpush1.msra.mxu0 0.0
          %494 = vmatprep.subr.mxu0 0.0
          %495 = vmatpush1.msra.mxu0 0.0
          %496 = vmatprep.subr.mxu0 0.0
          %497 = vmatpush1.msra.mxu0 0.0
          %498 = vmatprep.subr.mxu0 0.0
          %499 = vmatpush1.msra.mxu0 0.0
          %500 = vmatprep.subr.mxu0 0.0
          %501 = vmatpush1.msra.mxu0 0.0
          %502 = vmatprep.subr.mxu0 0.0
          %503 = vmatpush1.msra.mxu0 0.0
          %504 = vmatprep.subr.mxu0 0.0
          %505 = vmatpush1.msra.mxu0 0.0
          %506 = vmatprep.subr.mxu0 0.0
          %507 = vmatpush1.msra.mxu0 0.0
          %508 = vmatprep.subr.mxu0 0.0
          %509 = vmatpush1.msra.mxu0 0.0
          %510 = vmatprep.subr.mxu0 0.0
          %511 = vmatpush1.msra.mxu0 0.0
          %512 = vmatprep.subr.mxu0 0.0
          %513 = vmatpush1.msra.mxu0 0.0
          %514 = vmatprep.subr.mxu0 0.0
          %515 = vmatpush1.msra.mxu0 0.0
          %516 = vmatprep.subr.mxu0 0.0
          %517 = vmatpush1.msra.mxu0 0.0
          %518 = vmatprep.subr.mxu0 0.0
          %519 = vmatpush1.msra.mxu0 0.0
          %520 = vmatprep.subr.mxu0 0.0
          %521 = vmatpush1.msra.mxu0 0.0
          %522 = vmatprep.subr.mxu0 0.0
          %523 = vmatpush1.msra.mxu0 0.0
          %524 = vmatprep.subr.mxu0 0.0
          %525 = vmatpush1.msra.mxu0 0.0
          %526 = vmatprep.subr.mxu0 0.0
          %527 = vmatpush1.msra.mxu0 0.0
          %528 = vmatprep.subr.mxu0 0.0
          %529 = vmatpush1.msra.mxu0 0.0
          %530 = vmatprep.subr.mxu0 0.0
          %531 = vmatpush1.msra.mxu0 0.0
          %532 = vmatprep.subr.mxu0 0.0
          %533 = vmatpush1.msra.mxu0 0.0
          %534 = vmatprep.subr.mxu0 0.0
          %535 = vmatpush1.msra.mxu0 0.0
          %536 = vmatprep.subr.mxu0 0.0
          %537 = vmatpush1.msra.mxu0 0.0
          %538 = vmatprep.mubr.f32.mxu0 0.0
          %539 = vmatmul.mubr.f32.gmra.mrb[0].mxu0 %v332
          %v540 = vpop.f32.mrb[0].mxu0
          %v541 = vadd.f32 0.0, %v540
          %v542 = vpop.f32.mrb[0].mxu0
          %543 = vdwg.mxu0
          %544 = vmatprep.subr.mxu0 0.0
          %545 = vmatpush1.msra.mxu0 %v326
          %546 = vmatprep.subr.mxu0 0.0
          %547 = vmatpush1.msra.mxu0 %v327
          %548 = vmatprep.subr.mxu0 0.0
          %549 = vmatpush1.msra.mxu0 %v328
          %550 = vmatprep.subr.mxu0 0.0
          %551 = vmatpush1.msra.mxu0 %v329
          %552 = vmatprep.subr.mxu0 0.0
          %553 = vmatpush1.msra.mxu0 0.0
          %554 = vmatprep.subr.mxu0 0.0
          %555 = vmatpush1.msra.mxu0 0.0
          %556 = vmatprep.subr.mxu0 0.0
          %557 = vmatpush1.msra.mxu0 0.0
          %558 = vmatprep.subr.mxu0 0.0
          %559 = vmatpush1.msra.mxu0 0.0
          %560 = vmatprep.subr.mxu0 0.0
          %561 = vmatpush1.msra.mxu0 0.0
          %562 = vmatprep.subr.mxu0 0.0
          %563 = vmatpush1.msra.mxu0 0.0
          %564 = vmatprep.subr.mxu0 0.0
          %565 = vmatpush1.msra.mxu0 0.0
          %566 = vmatprep.subr.mxu0 0.0
          %567 = vmatpush1.msra.mxu0 0.0
          %568 = vmatprep.subr.mxu0 0.0
          %569 = vmatpush1.msra.mxu0 0.0
          %570 = vmatprep.subr.mxu0 0.0
          %571 = vmatpush1.msra.mxu0 0.0
          %572 = vmatprep.subr.mxu0 0.0
          %573 = vmatpush1.msra.mxu0 0.0
          %574 = vmatprep.subr.mxu0 0.0
          %575 = vmatpush1.msra.mxu0 0.0
          %576 = vmatprep.subr.mxu0 0.0
          %577 = vmatpush1.msra.mxu0 0.0
          %578 = vmatprep.subr.mxu0 0.0
          %579 = vmatpush1.msra.mxu0 0.0
          %580 = vmatprep.subr.mxu0 0.0
          %581 = vmatpush1.msra.mxu0 0.0
          %582 = vmatprep.subr.mxu0 0.0
          %583 = vmatpush1.msra.mxu0 0.0
          %584 = vmatprep.subr.mxu0 0.0
          %585 = vmatpush1.msra.mxu0 0.0
          %586 = vmatprep.subr.mxu0 0.0
          %587 = vmatpush1.msra.mxu0 0.0
          %588 = vmatprep.subr.mxu0 0.0
          %589 = vmatpush1.msra.mxu0 0.0
          %590 = vmatprep.subr.mxu0 0.0
          %591 = vmatpush1.msra.mxu0 0.0
          %592 = vmatprep.subr.mxu0 0.0
          %593 = vmatpush1.msra.mxu0 0.0
          %594 = vmatprep.subr.mxu0 0.0
          %595 = vmatpush1.msra.mxu0 0.0
          %596 = vmatprep.subr.mxu0 0.0
          %597 = vmatpush1.msra.mxu0 0.0
          %598 = vmatprep.subr.mxu0 0.0
          %599 = vmatpush1.msra.mxu0 0.0
          %600 = vmatprep.subr.mxu0 0.0
          %601 = vmatpush1.msra.mxu0 0.0
          %602 = vmatprep.subr.mxu0 0.0
          %603 = vmatpush1.msra.mxu0 0.0
          %604 = vmatprep.subr.mxu0 0.0
          %605 = vmatpush1.msra.mxu0 0.0
          %606 = vmatprep.subr.mxu0 0.0
          %607 = vmatpush1.msra.mxu0 0.0
          %608 = vmatprep.mubr.f32.mxu0 0.0
          %609 = vmatmul.mubr.f32.gmra.mrb[0].mxu0 %v332
          %v610 = vpop.f32.mrb[0].mxu0
          %v611 = vadd.f32 0.0, %v610
          %v612 = vpop.f32.mrb[0].mxu0
          %613 = vdwg.mxu0
          %v614 = vmul.f32 %v401, 0.35355338
          %v615 = vmul.f32 %v471, 0.35355338
          %v616 = vmul.f32 %v541, 0.35355338
          %v617 = vmul.f32 %v611, 0.35355338
          %vm618 = vcmask 64512
          %619 = vst.msk [vmem:[#allocation2] sm:$0xff] %vm618, %v614
          %620 = vst.msk [vmem:[#allocation2 + $0x8] sm:$0xff] %vm618, %v615
          %621 = vst.msk [vmem:[#allocation2 + $0x10] sm:$0xff] %vm618, %v616
          %622 = vst.msk [vmem:[#allocation2 + $0x18] sm:$0xff] %vm618, %v617
          %vm623 = vcmask 7168
          %624 = vst.msk [vmem:[#allocation3] sm:$0xff] %vm623, -inf
          %625 = vst.msk [vmem:[#allocation3 + $0x8] sm:$0xff] %vm623, -inf
          %626 = vst.msk [vmem:[#allocation3 + $0x10] sm:$0xff] %vm623, -inf
          %627 = vst.msk [vmem:[#allocation3 + $0x18] sm:$0xff] %vm623, -inf
          %628 = vst.msk [vmem:[#allocation4] sm:$0xff] %vm623, 0.0
          %629 = vst.msk [vmem:[#allocation4 + $0x8] sm:$0xff] %vm623, 0.0
          %630 = vst.msk [vmem:[#allocation4 + $0x10] sm:$0xff] %vm623, 0.0
          %631 = vst.msk [vmem:[#allocation4 + $0x18] sm:$0xff] %vm623, 0.0
          %632 = vst.msk [vmem:[#allocation5] sm:$0xff] %vm618, 0.0
          %633 = vst.msk [vmem:[#allocation5 + $0x8] sm:$0xff] %vm618, 0.0
          %634 = vst.msk [vmem:[#allocation5 + $0x10] sm:$0xff] %vm618, 0.0
          %635 = vst.msk [vmem:[#allocation5 + $0x18] sm:$0xff] %vm618, 0.0
        $region48: #{tpu_custom_call.1} parent=43 // pred_fallthru
          _
        %s636 = sadd.s32 %s307, 7
        %p637 = scmp.le.s32.totalorder %s308, %s636
        // Predicated region
        $region49: #{tpu_custom_call.1} parent=43 // pred_check
          %p638 = pneg %p637
        $region50: #{tpu_custom_call.1} parent=43 // pred_check_branch
          %640 = sbr.rel (%p638) target = $region52
        $region51: #{tpu_custom_call.1} parent=43 // pred_region
          %v641 = vld [vmem:[%s306] sm:$0xff]
          %v642 = vld [vmem:[%s3] sm:$0xff]
          %v643 = vld [vmem:[%s3 + $0x8] sm:$0xff]
          %v644 = vld [vmem:[%s3 + $0x10] sm:$0xff]
          %v645 = vld [vmem:[%s3 + $0x18] sm:$0xff]
          %v646 = vld [vmem:[%s3 + $0x20] sm:$0xff]
          %v647 = vld [vmem:[%s3 + $0x28] sm:$0xff]
          %v648 = vld [vmem:[%s3 + $0x30] sm:$0xff]
          %v649 = vld [vmem:[%s3 + $0x38] sm:$0xff]
          %v650 = vld [vmem:[%s3 + $0x40] sm:$0xff]
          %v651 = vld [vmem:[%s3 + $0x48] sm:$0xff]
          %v652 = vld [vmem:[%s3 + $0x50] sm:$0xff]
          %v653 = vld [vmem:[%s3 + $0x58] sm:$0xff]
          %v654 = vld [vmem:[%s3 + $0x60] sm:$0xff]
          %v655 = vld [vmem:[%s3 + $0x68] sm:$0xff]
          %v656 = vld [vmem:[%s3 + $0x70] sm:$0xff]
          %v657 = vld [vmem:[%s3 + $0x78] sm:$0xff]
          %vm658 = vcmask 261120
          %v660 = vsel %vm658, %v641, 0
          %662 = vmatprep.subr.mxu0 0.0
          %663 = vmatpush1.msra.mxu0 %v642
          %664 = vmatprep.subr.mxu0 0.0
          %665 = vmatpush1.msra.mxu0 %v643
          %666 = vmatprep.subr.mxu0 0.0
          %667 = vmatpush1.msra.mxu0 %v644
          %668 = vmatprep.subr.mxu0 0.0
          %669 = vmatpush1.msra.mxu0 %v645
          %670 = vmatprep.subr.mxu0 0.0
          %671 = vmatpush1.msra.mxu0 0.0
          %672 = vmatprep.subr.mxu0 0.0
          %673 = vmatpush1.msra.mxu0 0.0
          %674 = vmatprep.subr.mxu0 0.0
          %675 = vmatpush1.msra.mxu0 0.0
          %676 = vmatprep.subr.mxu0 0.0
          %677 = vmatpush1.msra.mxu0 0.0
          %678 = vmatprep.subr.mxu0 0.0
          %679 = vmatpush1.msra.mxu0 0.0
          %680 = vmatprep.subr.mxu0 0.0
          %681 = vmatpush1.msra.mxu0 0.0
          %682 = vmatprep.subr.mxu0 0.0
          %683 = vmatpush1.msra.mxu0 0.0
          %684 = vmatprep.subr.mxu0 0.0
          %685 = vmatpush1.msra.mxu0 0.0
          %686 = vmatprep.subr.mxu0 0.0
          %687 = vmatpush1.msra.mxu0 0.0
          %688 = vmatprep.subr.mxu0 0.0
          %689 = vmatpush1.msra.mxu0 0.0
          %690 = vmatprep.subr.mxu0 0.0
          %691 = vmatpush1.msra.mxu0 0.0
          %692 = vmatprep.subr.mxu0 0.0
          %693 = vmatpush1.msra.mxu0 0.0
          %694 = vmatprep.subr.mxu0 0.0
          %695 = vmatpush1.msra.mxu0 0.0
          %696 = vmatprep.subr.mxu0 0.0
          %697 = vmatpush1.msra.mxu0 0.0
          %698 = vmatprep.subr.mxu0 0.0
          %699 = vmatpush1.msra.mxu0 0.0
          %700 = vmatprep.subr.mxu0 0.0
          %701 = vmatpush1.msra.mxu0 0.0
          %702 = vmatprep.subr.mxu0 0.0
          %703 = vmatpush1.msra.mxu0 0.0
          %704 = vmatprep.subr.mxu0 0.0
          %705 = vmatpush1.msra.mxu0 0.0
          %706 = vmatprep.subr.mxu0 0.0
          %707 = vmatpush1.msra.mxu0 0.0
          %708 = vmatprep.subr.mxu0 0.0
          %709 = vmatpush1.msra.mxu0 0.0
          %710 = vmatprep.subr.mxu0 0.0
          %711 = vmatpush1.msra.mxu0 0.0
          %712 = vmatprep.subr.mxu0 0.0
          %713 = vmatpush1.msra.mxu0 0.0
          %714 = vmatprep.subr.mxu0 0.0
          %715 = vmatpush1.msra.mxu0 0.0
          %716 = vmatprep.subr.mxu0 0.0
          %717 = vmatpush1.msra.mxu0 0.0
          %718 = vmatprep.subr.mxu0 0.0
          %719 = vmatpush1.msra.mxu0 0.0
          %720 = vmatprep.subr.mxu0 0.0
          %721 = vmatpush1.msra.mxu0 0.0
          %722 = vmatprep.subr.mxu0 0.0
          %723 = vmatpush1.msra.mxu0 0.0
          %724 = vmatprep.subr.mxu0 0.0
          %725 = vmatpush1.msra.mxu0 0.0
          %726 = vmatprep.mubr.f32.mxu0 0.0
          %727 = vmatmul.mubr.f32.gmra.mrb[0].mxu0 %v660
          %v728 = vpop.f32.mrb[0].mxu0
          %v729 = vadd.f32 0.0, %v728
          %v730 = vpop.f32.mrb[0].mxu0
          %731 = vdwg.mxu0
          %732 = vmatprep.subr.mxu0 0.0
          %733 = vmatpush1.msra.mxu0 %v646
          %734 = vmatprep.subr.mxu0 0.0
          %735 = vmatpush1.msra.mxu0 %v647
          %736 = vmatprep.subr.mxu0 0.0
          %737 = vmatpush1.msra.mxu0 %v648
          %738 = vmatprep.subr.mxu0 0.0
          %739 = vmatpush1.msra.mxu0 %v649
          %740 = vmatprep.subr.mxu0 0.0
          %741 = vmatpush1.msra.mxu0 0.0
          %742 = vmatprep.subr.mxu0 0.0
          %743 = vmatpush1.msra.mxu0 0.0
          %744 = vmatprep.subr.mxu0 0.0
          %745 = vmatpush1.msra.mxu0 0.0
          %746 = vmatprep.subr.mxu0 0.0
          %747 = vmatpush1.msra.mxu0 0.0
          %748 = vmatprep.subr.mxu0 0.0
          %749 = vmatpush1.msra.mxu0 0.0
          %750 = vmatprep.subr.mxu0 0.0
          %751 = vmatpush1.msra.mxu0 0.0
          %752 = vmatprep.subr.mxu0 0.0
          %753 = vmatpush1.msra.mxu0 0.0
          %754 = vmatprep.subr.mxu0 0.0
          %755 = vmatpush1.msra.mxu0 0.0
          %756 = vmatprep.subr.mxu0 0.0
          %757 = vmatpush1.msra.mxu0 0.0
          %758 = vmatprep.subr.mxu0 0.0
          %759 = vmatpush1.msra.mxu0 0.0
          %760 = vmatprep.subr.mxu0 0.0
          %761 = vmatpush1.msra.mxu0 0.0
          %762 = vmatprep.subr.mxu0 0.0
          %763 = vmatpush1.msra.mxu0 0.0
          %764 = vmatprep.subr.mxu0 0.0
          %765 = vmatpush1.msra.mxu0 0.0
          %766 = vmatprep.subr.mxu0 0.0
          %767 = vmatpush1.msra.mxu0 0.0
          %768 = vmatprep.subr.mxu0 0.0
          %769 = vmatpush1.msra.mxu0 0.0
          %770 = vmatprep.subr.mxu0 0.0
          %771 = vmatpush1.msra.mxu0 0.0
          %772 = vmatprep.subr.mxu0 0.0
          %773 = vmatpush1.msra.mxu0 0.0
          %774 = vmatprep.subr.mxu0 0.0
          %775 = vmatpush1.msra.mxu0 0.0
          %776 = vmatprep.subr.mxu0 0.0
          %777 = vmatpush1.msra.mxu0 0.0
          %778 = vmatprep.subr.mxu0 0.0
          %779 = vmatpush1.msra.mxu0 0.0
          %780 = vmatprep.subr.mxu0 0.0
          %781 = vmatpush1.msra.mxu0 0.0
          %782 = vmatprep.subr.mxu0 0.0
          %783 = vmatpush1.msra.mxu0 0.0
          %784 = vmatprep.subr.mxu0 0.0
          %785 = vmatpush1.msra.mxu0 0.0
          %786 = vmatprep.subr.mxu0 0.0
          %787 = vmatpush1.msra.mxu0 0.0
          %788 = vmatprep.subr.mxu0 0.0
          %789 = vmatpush1.msra.mxu0 0.0
          %790 = vmatprep.subr.mxu0 0.0
          %791 = vmatpush1.msra.mxu0 0.0
          %792 = vmatprep.subr.mxu0 0.0
          %793 = vmatpush1.msra.mxu0 0.0
          %794 = vmatprep.subr.mxu0 0.0
          %795 = vmatpush1.msra.mxu0 0.0
          %796 = vmatprep.mubr.f32.mxu0 0.0
          %797 = vmatmul.mubr.f32.gmra.mrb[0].mxu0 %v660
          %v798 = vpop.f32.mrb[0].mxu0
          %v799 = vadd.f32 0.0, %v798
          %v800 = vpop.f32.mrb[0].mxu0
          %801 = vdwg.mxu0
          %802 = vmatprep.subr.mxu0 0.0
          %803 = vmatpush1.msra.mxu0 %v650
          %804 = vmatprep.subr.mxu0 0.0
          %805 = vmatpush1.msra.mxu0 %v651
          %806 = vmatprep.subr.mxu0 0.0
          %807 = vmatpush1.msra.mxu0 %v652
          %808 = vmatprep.subr.mxu0 0.0
          %809 = vmatpush1.msra.mxu0 %v653
          %810 = vmatprep.subr.mxu0 0.0
          %811 = vmatpush1.msra.mxu0 0.0
          %812 = vmatprep.subr.mxu0 0.0
          %813 = vmatpush1.msra.mxu0 0.0
          %814 = vmatprep.subr.mxu0 0.0
          %815 = vmatpush1.msra.mxu0 0.0
          %816 = vmatprep.subr.mxu0 0.0
          %817 = vmatpush1.msra.mxu0 0.0
          %818 = vmatprep.subr.mxu0 0.0
          %819 = vmatpush1.msra.mxu0 0.0
          %820 = vmatprep.subr.mxu0 0.0
          %821 = vmatpush1.msra.mxu0 0.0
          %822 = vmatprep.subr.mxu0 0.0
          %823 = vmatpush1.msra.mxu0 0.0
          %824 = vmatprep.subr.mxu0 0.0
          %825 = vmatpush1.msra.mxu0 0.0
          %826 = vmatprep.subr.mxu0 0.0
          %827 = vmatpush1.msra.mxu0 0.0
          %828 = vmatprep.subr.mxu0 0.0
          %829 = vmatpush1.msra.mxu0 0.0
          %830 = vmatprep.subr.mxu0 0.0
          %831 = vmatpush1.msra.mxu0 0.0
          %832 = vmatprep.subr.mxu0 0.0
          %833 = vmatpush1.msra.mxu0 0.0
          %834 = vmatprep.subr.mxu0 0.0
          %835 = vmatpush1.msra.mxu0 0.0
          %836 = vmatprep.subr.mxu0 0.0
          %837 = vmatpush1.msra.mxu0 0.0
          %838 = vmatprep.subr.mxu0 0.0
          %839 = vmatpush1.msra.mxu0 0.0
          %840 = vmatprep.subr.mxu0 0.0
          %841 = vmatpush1.msra.mxu0 0.0
          %842 = vmatprep.subr.mxu0 0.0
          %843 = vmatpush1.msra.mxu0 0.0
          %844 = vmatprep.subr.mxu0 0.0
          %845 = vmatpush1.msra.mxu0 0.0
          %846 = vmatprep.subr.mxu0 0.0
          %847 = vmatpush1.msra.mxu0 0.0
          %848 = vmatprep.subr.mxu0 0.0
          %849 = vmatpush1.msra.mxu0 0.0
          %850 = vmatprep.subr.mxu0 0.0
          %851 = vmatpush1.msra.mxu0 0.0
          %852 = vmatprep.subr.mxu0 0.0
          %853 = vmatpush1.msra.mxu0 0.0
          %854 = vmatprep.subr.mxu0 0.0
          %855 = vmatpush1.msra.mxu0 0.0
          %856 = vmatprep.subr.mxu0 0.0
          %857 = vmatpush1.msra.mxu0 0.0
          %858 = vmatprep.subr.mxu0 0.0
          %859 = vmatpush1.msra.mxu0 0.0
          %860 = vmatprep.subr.mxu0 0.0
          %861 = vmatpush1.msra.mxu0 0.0
          %862 = vmatprep.subr.mxu0 0.0
          %863 = vmatpush1.msra.mxu0 0.0
          %864 = vmatprep.subr.mxu0 0.0
          %865 = vmatpush1.msra.mxu0 0.0
          %866 = vmatprep.mubr.f32.mxu0 0.0
          %867 = vmatmul.mubr.f32.gmra.mrb[0].mxu0 %v660
          %v868 = vpop.f32.mrb[0].mxu0
          %v869 = vadd.f32 0.0, %v868
          %v870 = vpop.f32.mrb[0].mxu0
          %871 = vdwg.mxu0
          %872 = vmatprep.subr.mxu0 0.0
          %873 = vmatpush1.msra.mxu0 %v654
          %874 = vmatprep.subr.mxu0 0.0
          %875 = vmatpush1.msra.mxu0 %v655
          %876 = vmatprep.subr.mxu0 0.0
          %877 = vmatpush1.msra.mxu0 %v656
          %878 = vmatprep.subr.mxu0 0.0
          %879 = vmatpush1.msra.mxu0 %v657
          %880 = vmatprep.subr.mxu0 0.0
          %881 = vmatpush1.msra.mxu0 0.0
          %882 = vmatprep.subr.mxu0 0.0
          %883 = vmatpush1.msra.mxu0 0.0
          %884 = vmatprep.subr.mxu0 0.0
          %885 = vmatpush1.msra.mxu0 0.0
          %886 = vmatprep.subr.mxu0 0.0
          %887 = vmatpush1.msra.mxu0 0.0
          %888 = vmatprep.subr.mxu0 0.0
          %889 = vmatpush1.msra.mxu0 0.0
          %890 = vmatprep.subr.mxu0 0.0
          %891 = vmatpush1.msra.mxu0 0.0
          %892 = vmatprep.subr.mxu0 0.0
          %893 = vmatpush1.msra.mxu0 0.0
          %894 = vmatprep.subr.mxu0 0.0
          %895 = vmatpush1.msra.mxu0 0.0
          %896 = vmatprep.subr.mxu0 0.0
          %897 = vmatpush1.msra.mxu0 0.0
          %898 = vmatprep.subr.mxu0 0.0
          %899 = vmatpush1.msra.mxu0 0.0
          %900 = vmatprep.subr.mxu0 0.0
          %901 = vmatpush1.msra.mxu0 0.0
          %902 = vmatprep.subr.mxu0 0.0
          %903 = vmatpush1.msra.mxu0 0.0
          %904 = vmatprep.subr.mxu0 0.0
          %905 = vmatpush1.msra.mxu0 0.0
          %906 = vmatprep.subr.mxu0 0.0
          %907 = vmatpush1.msra.mxu0 0.0
          %908 = vmatprep.subr.mxu0 0.0
          %909 = vmatpush1.msra.mxu0 0.0
          %910 = vmatprep.subr.mxu0 0.0
          %911 = vmatpush1.msra.mxu0 0.0
          %912 = vmatprep.subr.mxu0 0.0
          %913 = vmatpush1.msra.mxu0 0.0
          %914 = vmatprep.subr.mxu0 0.0
          %915 = vmatpush1.msra.mxu0 0.0
          %916 = vmatprep.subr.mxu0 0.0
          %917 = vmatpush1.msra.mxu0 0.0
          %918 = vmatprep.subr.mxu0 0.0
          %919 = vmatpush1.msra.mxu0 0.0
          %920 = vmatprep.subr.mxu0 0.0
          %921 = vmatpush1.msra.mxu0 0.0
          %922 = vmatprep.subr.mxu0 0.0
          %923 = vmatpush1.msra.mxu0 0.0
          %924 = vmatprep.subr.mxu0 0.0
          %925 = vmatpush1.msra.mxu0 0.0
          %926 = vmatprep.subr.mxu0 0.0
          %927 = vmatpush1.msra.mxu0 0.0
          %928 = vmatprep.subr.mxu0 0.0
          %929 = vmatpush1.msra.mxu0 0.0
          %930 = vmatprep.subr.mxu0 0.0
          %931 = vmatpush1.msra.mxu0 0.0
          %932 = vmatprep.subr.mxu0 0.0
          %933 = vmatpush1.msra.mxu0 0.0
          %934 = vmatprep.subr.mxu0 0.0
          %935 = vmatpush1.msra.mxu0 0.0
          %936 = vmatprep.mubr.f32.mxu0 0.0
          %937 = vmatmul.mubr.f32.gmra.mrb[0].mxu0 %v660
          %v938 = vpop.f32.mrb[0].mxu0
          %v939 = vadd.f32 0.0, %v938
          %v940 = vpop.f32.mrb[0].mxu0
          %941 = vdwg.mxu0
          %v942 = vld [vmem:[%s4] sm:$0xff]
          %v943 = vld [vmem:[%s4 + $0x8] sm:$0xff]
          %v944 = vld [vmem:[%s4 + $0x10] sm:$0xff]
          %v945 = vld [vmem:[%s4 + $0x18] sm:$0xff]
          %v946 = vld [vmem:[%s4 + $0x20] sm:$0xff]
          %v947 = vld [vmem:[%s4 + $0x28] sm:$0xff]
          %v948 = vld [vmem:[%s4 + $0x30] sm:$0xff]
          %v949 = vld [vmem:[%s4 + $0x38] sm:$0xff]
          %v950 = vld [vmem:[%s4 + $0x40] sm:$0xff]
          %v951 = vld [vmem:[%s4 + $0x48] sm:$0xff]
          %v952 = vld [vmem:[%s4 + $0x50] sm:$0xff]
          %v953 = vld [vmem:[%s4 + $0x58] sm:$0xff]
          %v954 = vld [vmem:[%s4 + $0x60] sm:$0xff]
          %v955 = vld [vmem:[%s4 + $0x68] sm:$0xff]
          %v956 = vld [vmem:[%s4 + $0x70] sm:$0xff]
          %v957 = vld [vmem:[%s4 + $0x78] sm:$0xff]
          %958 = vmatprep.subr.mxu0 0.0
          %959 = vmatpush1.msra.mxu0 %v942
          %960 = vmatprep.subr.mxu0 0.0
          %961 = vmatpush1.msra.mxu0 %v943
          %962 = vmatprep.subr.mxu0 0.0
          %963 = vmatpush1.msra.mxu0 %v944
          %964 = vmatprep.subr.mxu0 0.0
          %965 = vmatpush1.msra.mxu0 %v945
          %966 = vmatprep.subr.mxu0 0.0
          %967 = vmatpush1.msra.mxu0 0.0
          %968 = vmatprep.subr.mxu0 0.0
          %969 = vmatpush1.msra.mxu0 0.0
          %970 = vmatprep.subr.mxu0 0.0
          %971 = vmatpush1.msra.mxu0 0.0
          %972 = vmatprep.subr.mxu0 0.0
          %973 = vmatpush1.msra.mxu0 0.0
          %974 = vmatprep.subr.mxu0 0.0
          %975 = vmatpush1.msra.mxu0 0.0
          %976 = vmatprep.subr.mxu0 0.0
          %977 = vmatpush1.msra.mxu0 0.0
          %978 = vmatprep.subr.mxu0 0.0
          %979 = vmatpush1.msra.mxu0 0.0
          %980 = vmatprep.subr.mxu0 0.0
          %981 = vmatpush1.msra.mxu0 0.0
          %982 = vmatprep.subr.mxu0 0.0
          %983 = vmatpush1.msra.mxu0 0.0
          %984 = vmatprep.subr.mxu0 0.0
          %985 = vmatpush1.msra.mxu0 0.0
          %986 = vmatprep.subr.mxu0 0.0
          %987 = vmatpush1.msra.mxu0 0.0
          %988 = vmatprep.subr.mxu0 0.0
          %989 = vmatpush1.msra.mxu0 0.0
          %990 = vmatprep.subr.mxu0 0.0
          %991 = vmatpush1.msra.mxu0 0.0
          %992 = vmatprep.subr.mxu0 0.0
          %993 = vmatpush1.msra.mxu0 0.0
          %994 = vmatprep.subr.mxu0 0.0
          %995 = vmatpush1.msra.mxu0 0.0
          %996 = vmatprep.subr.mxu0 0.0
          %997 = vmatpush1.msra.mxu0 0.0
          %998 = vmatprep.subr.mxu0 0.0
          %999 = vmatpush1.msra.mxu0 0.0
          %1000 = vmatprep.subr.mxu0 0.0
          %1001 = vmatpush1.msra.mxu0 0.0
          %1002 = vmatprep.subr.mxu0 0.0
          %1003 = vmatpush1.msra.mxu0 0.0
          %1004 = vmatprep.subr.mxu0 0.0
          %1005 = vmatpush1.msra.mxu0 0.0
          %1006 = vmatprep.subr.mxu0 0.0
          %1007 = vmatpush1.msra.mxu0 0.0
          %1008 = vmatprep.subr.mxu0 0.0
          %1009 = vmatpush1.msra.mxu0 0.0
          %1010 = vmatprep.subr.mxu0 0.0
          %1011 = vmatpush1.msra.mxu0 0.0
          %1012 = vmatprep.subr.mxu0 0.0
          %1013 = vmatpush1.msra.mxu0 0.0
          %1014 = vmatprep.subr.mxu0 0.0
          %1015 = vmatpush1.msra.mxu0 0.0
          %1016 = vmatprep.subr.mxu0 0.0
          %1017 = vmatpush1.msra.mxu0 0.0
          %1018 = vmatprep.subr.mxu0 0.0
          %1019 = vmatpush1.msra.mxu0 0.0
          %1020 = vmatprep.subr.mxu0 0.0
          %1021 = vmatpush1.msra.mxu0 0.0
          %1022 = vmatprep.mubr.f32.mxu0 0.0
          %1023 = vmatmul.mubr.f32.gmra.mrb[0].mxu0 %v660
          %v1024 = vpop.f32.mrb[0].mxu0
          %v1025 = vadd.f32 0.0, %v1024
          %v1026 = vpop.f32.mrb[0].mxu0
          %1027 = vdwg.mxu0
          %1028 = vmatprep.subr.mxu0 0.0
          %1029 = vmatpush1.msra.mxu0 %v946
          %1030 = vmatprep.subr.mxu0 0.0
          %1031 = vmatpush1.msra.mxu0 %v947
          %1032 = vmatprep.subr.mxu0 0.0
          %1033 = vmatpush1.msra.mxu0 %v948
          %1034 = vmatprep.subr.mxu0 0.0
          %1035 = vmatpush1.msra.mxu0 %v949
          %1036 = vmatprep.subr.mxu0 0.0
          %1037 = vmatpush1.msra.mxu0 0.0
          %1038 = vmatprep.subr.mxu0 0.0
          %1039 = vmatpush1.msra.mxu0 0.0
          %1040 = vmatprep.subr.mxu0 0.0
          %1041 = vmatpush1.msra.mxu0 0.0
          %1042 = vmatprep.subr.mxu0 0.0
          %1043 = vmatpush1.msra.mxu0 0.0
          %1044 = vmatprep.subr.mxu0 0.0
          %1045 = vmatpush1.msra.mxu0 0.0
          %1046 = vmatprep.subr.mxu0 0.0
          %1047 = vmatpush1.msra.mxu0 0.0
          %1048 = vmatprep.subr.mxu0 0.0
          %1049 = vmatpush1.msra.mxu0 0.0
          %1050 = vmatprep.subr.mxu0 0.0
          %1051 = vmatpush1.msra.mxu0 0.0
          %1052 = vmatprep.subr.mxu0 0.0
          %1053 = vmatpush1.msra.mxu0 0.0
          %1054 = vmatprep.subr.mxu0 0.0
          %1055 = vmatpush1.msra.mxu0 0.0
          %1056 = vmatprep.subr.mxu0 0.0
          %1057 = vmatpush1.msra.mxu0 0.0
          %1058 = vmatprep.subr.mxu0 0.0
          %1059 = vmatpush1.msra.mxu0 0.0
          %1060 = vmatprep.subr.mxu0 0.0
          %1061 = vmatpush1.msra.mxu0 0.0
          %1062 = vmatprep.subr.mxu0 0.0
          %1063 = vmatpush1.msra.mxu0 0.0
          %1064 = vmatprep.subr.mxu0 0.0
          %1065 = vmatpush1.msra.mxu0 0.0
          %1066 = vmatprep.subr.mxu0 0.0
          %1067 = vmatpush1.msra.mxu0 0.0
          %1068 = vmatprep.subr.mxu0 0.0
          %1069 = vmatpush1.msra.mxu0 0.0
          %1070 = vmatprep.subr.mxu0 0.0
          %1071 = vmatpush1.msra.mxu0 0.0
          %1072 = vmatprep.subr.mxu0 0.0
          %1073 = vmatpush1.msra.mxu0 0.0
          %1074 = vmatprep.subr.mxu0 0.0
          %1075 = vmatpush1.msra.mxu0 0.0
          %1076 = vmatprep.subr.mxu0 0.0
          %1077 = vmatpush1.msra.mxu0 0.0
          %1078 = vmatprep.subr.mxu0 0.0
          %1079 = vmatpush1.msra.mxu0 0.0
          %1080 = vmatprep.subr.mxu0 0.0
          %1081 = vmatpush1.msra.mxu0 0.0
          %1082 = vmatprep.subr.mxu0 0.0
          %1083 = vmatpush1.msra.mxu0 0.0
          %1084 = vmatprep.subr.mxu0 0.0
          %1085 = vmatpush1.msra.mxu0 0.0
          %1086 = vmatprep.subr.mxu0 0.0
          %1087 = vmatpush1.msra.mxu0 0.0
          %1088 = vmatprep.subr.mxu0 0.0
          %1089 = vmatpush1.msra.mxu0 0.0
          %1090 = vmatprep.subr.mxu0 0.0
          %1091 = vmatpush1.msra.mxu0 0.0
          %1092 = vmatprep.mubr.f32.mxu0 0.0
          %1093 = vmatmul.mubr.f32.gmra.mrb[0].mxu0 %v660
          %v1094 = vpop.f32.mrb[0].mxu0
          %v1095 = vadd.f32 0.0, %v1094
          %v1096 = vpop.f32.mrb[0].mxu0
          %1097 = vdwg.mxu0
          %1098 = vmatprep.subr.mxu0 0.0
          %1099 = vmatpush1.msra.mxu0 %v950
          %1100 = vmatprep.subr.mxu0 0.0
          %1101 = vmatpush1.msra.mxu0 %v951
          %1102 = vmatprep.subr.mxu0 0.0
          %1103 = vmatpush1.msra.mxu0 %v952
          %1104 = vmatprep.subr.mxu0 0.0
          %1105 = vmatpush1.msra.mxu0 %v953
          %1106 = vmatprep.subr.mxu0 0.0
          %1107 = vmatpush1.msra.mxu0 0.0
          %1108 = vmatprep.subr.mxu0 0.0
          %1109 = vmatpush1.msra.mxu0 0.0
          %1110 = vmatprep.subr.mxu0 0.0
          %1111 = vmatpush1.msra.mxu0 0.0
          %1112 = vmatprep.subr.mxu0 0.0
          %1113 = vmatpush1.msra.mxu0 0.0
          %1114 = vmatprep.subr.mxu0 0.0
          %1115 = vmatpush1.msra.mxu0 0.0
          %1116 = vmatprep.subr.mxu0 0.0
          %1117 = vmatpush1.msra.mxu0 0.0
          %1118 = vmatprep.subr.mxu0 0.0
          %1119 = vmatpush1.msra.mxu0 0.0
          %1120 = vmatprep.subr.mxu0 0.0
          %1121 = vmatpush1.msra.mxu0 0.0
          %1122 = vmatprep.subr.mxu0 0.0
          %1123 = vmatpush1.msra.mxu0 0.0
          %1124 = vmatprep.subr.mxu0 0.0
          %1125 = vmatpush1.msra.mxu0 0.0
          %1126 = vmatprep.subr.mxu0 0.0
          %1127 = vmatpush1.msra.mxu0 0.0
          %1128 = vmatprep.subr.mxu0 0.0
          %1129 = vmatpush1.msra.mxu0 0.0
          %1130 = vmatprep.subr.mxu0 0.0
          %1131 = vmatpush1.msra.mxu0 0.0
          %1132 = vmatprep.subr.mxu0 0.0
          %1133 = vmatpush1.msra.mxu0 0.0
          %1134 = vmatprep.subr.mxu0 0.0
          %1135 = vmatpush1.msra.mxu0 0.0
          %1136 = vmatprep.subr.mxu0 0.0
          %1137 = vmatpush1.msra.mxu0 0.0
          %1138 = vmatprep.subr.mxu0 0.0
          %1139 = vmatpush1.msra.mxu0 0.0
          %1140 = vmatprep.subr.mxu0 0.0
          %1141 = vmatpush1.msra.mxu0 0.0
          %1142 = vmatprep.subr.mxu0 0.0
          %1143 = vmatpush1.msra.mxu0 0.0
          %1144 = vmatprep.subr.mxu0 0.0
          %1145 = vmatpush1.msra.mxu0 0.0
          %1146 = vmatprep.subr.mxu0 0.0
          %1147 = vmatpush1.msra.mxu0 0.0
          %1148 = vmatprep.subr.mxu0 0.0
          %1149 = vmatpush1.msra.mxu0 0.0
          %1150 = vmatprep.subr.mxu0 0.0
          %1151 = vmatpush1.msra.mxu0 0.0
          %1152 = vmatprep.subr.mxu0 0.0
          %1153 = vmatpush1.msra.mxu0 0.0
          %1154 = vmatprep.subr.mxu0 0.0
          %1155 = vmatpush1.msra.mxu0 0.0
          %1156 = vmatprep.subr.mxu0 0.0
          %1157 = vmatpush1.msra.mxu0 0.0
          %1158 = vmatprep.subr.mxu0 0.0
          %1159 = vmatpush1.msra.mxu0 0.0
          %1160 = vmatprep.subr.mxu0 0.0
          %1161 = vmatpush1.msra.mxu0 0.0
          %1162 = vmatprep.mubr.f32.mxu0 0.0
          %1163 = vmatmul.mubr.f32.gmra.mrb[0].mxu0 %v660
          %v1164 = vpop.f32.mrb[0].mxu0
          %v1165 = vadd.f32 0.0, %v1164
          %v1166 = vpop.f32.mrb[0].mxu0
          %1167 = vdwg.mxu0
          %1168 = vmatprep.subr.mxu0 0.0
          %1169 = vmatpush1.msra.mxu0 %v954
          %1170 = vmatprep.subr.mxu0 0.0
          %1171 = vmatpush1.msra.mxu0 %v955
          %1172 = vmatprep.subr.mxu0 0.0
          %1173 = vmatpush1.msra.mxu0 %v956
          %1174 = vmatprep.subr.mxu0 0.0
          %1175 = vmatpush1.msra.mxu0 %v957
          %1176 = vmatprep.subr.mxu0 0.0
          %1177 = vmatpush1.msra.mxu0 0.0
          %1178 = vmatprep.subr.mxu0 0.0
          %1179 = vmatpush1.msra.mxu0 0.0
          %1180 = vmatprep.subr.mxu0 0.0
          %1181 = vmatpush1.msra.mxu0 0.0
          %1182 = vmatprep.subr.mxu0 0.0
          %1183 = vmatpush1.msra.mxu0 0.0
          %1184 = vmatprep.subr.mxu0 0.0
          %1185 = vmatpush1.msra.mxu0 0.0
          %1186 = vmatprep.subr.mxu0 0.0
          %1187 = vmatpush1.msra.mxu0 0.0
          %1188 = vmatprep.subr.mxu0 0.0
          %1189 = vmatpush1.msra.mxu0 0.0
          %1190 = vmatprep.subr.mxu0 0.0
          %1191 = vmatpush1.msra.mxu0 0.0
          %1192 = vmatprep.subr.mxu0 0.0
          %1193 = vmatpush1.msra.mxu0 0.0
          %1194 = vmatprep.subr.mxu0 0.0
          %1195 = vmatpush1.msra.mxu0 0.0
          %1196 = vmatprep.subr.mxu0 0.0
          %1197 = vmatpush1.msra.mxu0 0.0
          %1198 = vmatprep.subr.mxu0 0.0
          %1199 = vmatpush1.msra.mxu0 0.0
          %1200 = vmatprep.subr.mxu0 0.0
          %1201 = vmatpush1.msra.mxu0 0.0
          %1202 = vmatprep.subr.mxu0 0.0
          %1203 = vmatpush1.msra.mxu0 0.0
          %1204 = vmatprep.subr.mxu0 0.0
          %1205 = vmatpush1.msra.mxu0 0.0
          %1206 = vmatprep.subr.mxu0 0.0
          %1207 = vmatpush1.msra.mxu0 0.0
          %1208 = vmatprep.subr.mxu0 0.0
          %1209 = vmatpush1.msra.mxu0 0.0
          %1210 = vmatprep.subr.mxu0 0.0
          %1211 = vmatpush1.msra.mxu0 0.0
          %1212 = vmatprep.subr.mxu0 0.0
          %1213 = vmatpush1.msra.mxu0 0.0
          %1214 = vmatprep.subr.mxu0 0.0
          %1215 = vmatpush1.msra.mxu0 0.0
          %1216 = vmatprep.subr.mxu0 0.0
          %1217 = vmatpush1.msra.mxu0 0.0
          %1218 = vmatprep.subr.mxu0 0.0
          %1219 = vmatpush1.msra.mxu0 0.0
          %1220 = vmatprep.subr.mxu0 0.0
          %1221 = vmatpush1.msra.mxu0 0.0
          %1222 = vmatprep.subr.mxu0 0.0
          %1223 = vmatpush1.msra.mxu0 0.0
          %1224 = vmatprep.subr.mxu0 0.0
          %1225 = vmatpush1.msra.mxu0 0.0
          %1226 = vmatprep.subr.mxu0 0.0
          %1227 = vmatpush1.msra.mxu0 0.0
          %1228 = vmatprep.subr.mxu0 0.0
          %1229 = vmatpush1.msra.mxu0 0.0
          %1230 = vmatprep.subr.mxu0 0.0
          %1231 = vmatpush1.msra.mxu0 0.0
          %1232 = vmatprep.mubr.f32.mxu0 0.0
          %1233 = vmatmul.mubr.f32.gmra.mrb[0].mxu0 %v660
          %v1234 = vpop.f32.mrb[0].mxu0
          %v1235 = vadd.f32 0.0, %v1234
          %v1236 = vpop.f32.mrb[0].mxu0
          %1237 = vdwg.mxu0
          %v1238 = vld [vmem:[#allocation2] sm:$0xff]
          %v1239 = vld [vmem:[#allocation2 + $0x8] sm:$0xff]
          %v1240 = vld [vmem:[#allocation2 + $0x10] sm:$0xff]
          %v1241 = vld [vmem:[#allocation2 + $0x18] sm:$0xff]
          %vm1242 = vcmask 64512
          %v1244 = vsel %vm1242, %v1238, 0
          %v1247 = vsel %vm1242, %v729, 0
          %1249 = vmatprep.subr.mxu0 0.0
          %1250 = vmatpush1.xpose.msra.mxu0 %v1247
          %1251 = vmatprep.subr.mxu0 0.0
          %1252 = vmatpush1.xpose.msra.mxu0 0.0
          %1253 = vmatprep.subr.mxu0 0.0
          %1254 = vmatpush1.xpose.msra.mxu0 0.0
          %1255 = vmatprep.subr.mxu0 0.0
          %1256 = vmatpush1.xpose.msra.mxu0 0.0
          %1257 = vmatprep.subr.mxu0 0.0
          %1258 = vmatpush1.xpose.msra.mxu0 0.0
          %1259 = vmatprep.subr.mxu0 0.0
          %1260 = vmatpush1.xpose.msra.mxu0 0.0
          %1261 = vmatprep.subr.mxu0 0.0
          %1262 = vmatpush1.xpose.msra.mxu0 0.0
          %1263 = vmatprep.subr.mxu0 0.0
          %1264 = vmatpush1.xpose.msra.mxu0 0.0
          %1265 = vmatprep.subr.mxu0 0.0
          %1266 = vmatpush1.xpose.msra.mxu0 0.0
          %1267 = vmatprep.subr.mxu0 0.0
          %1268 = vmatpush1.xpose.msra.mxu0 0.0
          %1269 = vmatprep.subr.mxu0 0.0
          %1270 = vmatpush1.xpose.msra.mxu0 0.0
          %1271 = vmatprep.subr.mxu0 0.0
          %1272 = vmatpush1.xpose.msra.mxu0 0.0
          %1273 = vmatprep.subr.mxu0 0.0
          %1274 = vmatpush1.xpose.msra.mxu0 0.0
          %1275 = vmatprep.subr.mxu0 0.0
          %1276 = vmatpush1.xpose.msra.mxu0 0.0
          %1277 = vmatprep.subr.mxu0 0.0
          %1278 = vmatpush1.xpose.msra.mxu0 0.0
          %1279 = vmatprep.subr.mxu0 0.0
          %1280 = vmatpush1.xpose.msra.mxu0 0.0
          %1281 = vmatprep.subr.mxu0 0.0
          %1282 = vmatpush1.xpose.msra.mxu0 0.0
          %1283 = vmatprep.subr.mxu0 0.0
          %1284 = vmatpush1.xpose.msra.mxu0 0.0
          %1285 = vmatprep.subr.mxu0 0.0
          %1286 = vmatpush1.xpose.msra.mxu0 0.0
          %1287 = vmatprep.subr.mxu0 0.0
          %1288 = vmatpush1.xpose.msra.mxu0 0.0
          %1289 = vmatprep.subr.mxu0 0.0
          %1290 = vmatpush1.xpose.msra.mxu0 0.0
          %1291 = vmatprep.subr.mxu0 0.0
          %1292 = vmatpush1.xpose.msra.mxu0 0.0
          %1293 = vmatprep.subr.mxu0 0.0
          %1294 = vmatpush1.xpose.msra.mxu0 0.0
          %1295 = vmatprep.subr.mxu0 0.0
          %1296 = vmatpush1.xpose.msra.mxu0 0.0
          %1297 = vmatprep.subr.mxu0 0.0
          %1298 = vmatpush1.xpose.msra.mxu0 0.0
          %1299 = vmatprep.subr.mxu0 0.0
          %1300 = vmatpush1.xpose.msra.mxu0 0.0
          %1301 = vmatprep.subr.mxu0 0.0
          %1302 = vmatpush1.xpose.msra.mxu0 0.0
          %1303 = vmatprep.subr.mxu0 0.0
          %1304 = vmatpush1.xpose.msra.mxu0 0.0
          %1305 = vmatprep.subr.mxu0 0.0
          %1306 = vmatpush1.xpose.msra.mxu0 0.0
          %1307 = vmatprep.subr.mxu0 0.0
          %1308 = vmatpush1.xpose.msra.mxu0 0.0
          %1309 = vmatprep.subr.mxu0 0.0
          %1310 = vmatpush1.xpose.msra.mxu0 0.0
          %1311 = vmatprep.subr.mxu0 0.0
          %1312 = vmatpush1.xpose.msra.mxu0 0.0
          %1313 = vmatprep.mubr.f32.mxu0 0.0
          %1314 = vmatmul.mubr.f32.gmra.mrb[0].mxu0 %v1244
          %v1315 = vpop.f32.mrb[0].mxu0
          %v1316 = vadd.f32 0.0, %v1315
          %v1317 = vpop.f32.mrb[0].mxu0
          %1318 = vdwg.mxu0
          %v1320 = vsel %vm1242, %v1239, 0
          %v1323 = vsel %vm1242, %v799, 0
          %1325 = vmatprep.subr.mxu0 0.0
          %1326 = vmatpush1.xpose.msra.mxu0 %v1323
          %1327 = vmatprep.subr.mxu0 0.0
          %1328 = vmatpush1.xpose.msra.mxu0 0.0
          %1329 = vmatprep.subr.mxu0 0.0
          %1330 = vmatpush1.xpose.msra.mxu0 0.0
          %1331 = vmatprep.subr.mxu0 0.0
          %1332 = vmatpush1.xpose.msra.mxu0 0.0
          %1333 = vmatprep.subr.mxu0 0.0
          %1334 = vmatpush1.xpose.msra.mxu0 0.0
          %1335 = vmatprep.subr.mxu0 0.0
          %1336 = vmatpush1.xpose.msra.mxu0 0.0
          %1337 = vmatprep.subr.mxu0 0.0
          %1338 = vmatpush1.xpose.msra.mxu0 0.0
          %1339 = vmatprep.subr.mxu0 0.0
          %1340 = vmatpush1.xpose.msra.mxu0 0.0
          %1341 = vmatprep.subr.mxu0 0.0
          %1342 = vmatpush1.xpose.msra.mxu0 0.0
          %1343 = vmatprep.subr.mxu0 0.0
          %1344 = vmatpush1.xpose.msra.mxu0 0.0
          %1345 = vmatprep.subr.mxu0 0.0
          %1346 = vmatpush1.xpose.msra.mxu0 0.0
          %1347 = vmatprep.subr.mxu0 0.0
          %1348 = vmatpush1.xpose.msra.mxu0 0.0
          %1349 = vmatprep.subr.mxu0 0.0
          %1350 = vmatpush1.xpose.msra.mxu0 0.0
          %1351 = vmatprep.subr.mxu0 0.0
          %1352 = vmatpush1.xpose.msra.mxu0 0.0
          %1353 = vmatprep.subr.mxu0 0.0
          %1354 = vmatpush1.xpose.msra.mxu0 0.0
          %1355 = vmatprep.subr.mxu0 0.0
          %1356 = vmatpush1.xpose.msra.mxu0 0.0
          %1357 = vmatprep.subr.mxu0 0.0
          %1358 = vmatpush1.xpose.msra.mxu0 0.0
          %1359 = vmatprep.subr.mxu0 0.0
          %1360 = vmatpush1.xpose.msra.mxu0 0.0
          %1361 = vmatprep.subr.mxu0 0.0
          %1362 = vmatpush1.xpose.msra.mxu0 0.0
          %1363 = vmatprep.subr.mxu0 0.0
          %1364 = vmatpush1.xpose.msra.mxu0 0.0
          %1365 = vmatprep.subr.mxu0 0.0
          %1366 = vmatpush1.xpose.msra.mxu0 0.0
          %1367 = vmatprep.subr.mxu0 0.0
          %1368 = vmatpush1.xpose.msra.mxu0 0.0
          %1369 = vmatprep.subr.mxu0 0.0
          %1370 = vmatpush1.xpose.msra.mxu0 0.0
          %1371 = vmatprep.subr.mxu0 0.0
          %1372 = vmatpush1.xpose.msra.mxu0 0.0
          %1373 = vmatprep.subr.mxu0 0.0
          %1374 = vmatpush1.xpose.msra.mxu0 0.0
          %1375 = vmatprep.subr.mxu0 0.0
          %1376 = vmatpush1.xpose.msra.mxu0 0.0
          %1377 = vmatprep.subr.mxu0 0.0
          %1378 = vmatpush1.xpose.msra.mxu0 0.0
          %1379 = vmatprep.subr.mxu0 0.0
          %1380 = vmatpush1.xpose.msra.mxu0 0.0
          %1381 = vmatprep.subr.mxu0 0.0
          %1382 = vmatpush1.xpose.msra.mxu0 0.0
          %1383 = vmatprep.subr.mxu0 0.0
          %1384 = vmatpush1.xpose.msra.mxu0 0.0
          %1385 = vmatprep.subr.mxu0 0.0
          %1386 = vmatpush1.xpose.msra.mxu0 0.0
          %1387 = vmatprep.subr.mxu0 0.0
          %1388 = vmatpush1.xpose.msra.mxu0 0.0
          %1389 = vmatprep.mubr.f32.mxu0 0.0
          %1390 = vmatmul.mubr.f32.gmra.mrb[0].mxu0 %v1320
          %v1391 = vpop.f32.mrb[0].mxu0
          %v1392 = vadd.f32 0.0, %v1391
          %v1393 = vpop.f32.mrb[0].mxu0
          %1394 = vdwg.mxu0
          %v1396 = vsel %vm1242, %v1240, 0
          %v1399 = vsel %vm1242, %v869, 0
          %1401 = vmatprep.subr.mxu0 0.0
          %1402 = vmatpush1.xpose.msra.mxu0 %v1399
          %1403 = vmatprep.subr.mxu0 0.0
          %1404 = vmatpush1.xpose.msra.mxu0 0.0
          %1405 = vmatprep.subr.mxu0 0.0
          %1406 = vmatpush1.xpose.msra.mxu0 0.0
          %1407 = vmatprep.subr.mxu0 0.0
          %1408 = vmatpush1.xpose.msra.mxu0 0.0
          %1409 = vmatprep.subr.mxu0 0.0
          %1410 = vmatpush1.xpose.msra.mxu0 0.0
          %1411 = vmatprep.subr.mxu0 0.0
          %1412 = vmatpush1.xpose.msra.mxu0 0.0
          %1413 = vmatprep.subr.mxu0 0.0
          %1414 = vmatpush1.xpose.msra.mxu0 0.0
          %1415 = vmatprep.subr.mxu0 0.0
          %1416 = vmatpush1.xpose.msra.mxu0 0.0
          %1417 = vmatprep.subr.mxu0 0.0
          %1418 = vmatpush1.xpose.msra.mxu0 0.0
          %1419 = vmatprep.subr.mxu0 0.0
          %1420 = vmatpush1.xpose.msra.mxu0 0.0
          %1421 = vmatprep.subr.mxu0 0.0
          %1422 = vmatpush1.xpose.msra.mxu0 0.0
          %1423 = vmatprep.subr.mxu0 0.0
          %1424 = vmatpush1.xpose.msra.mxu0 0.0
          %1425 = vmatprep.subr.mxu0 0.0
          %1426 = vmatpush1.xpose.msra.mxu0 0.0
          %1427 = vmatprep.subr.mxu0 0.0
          %1428 = vmatpush1.xpose.msra.mxu0 0.0
          %1429 = vmatprep.subr.mxu0 0.0
          %1430 = vmatpush1.xpose.msra.mxu0 0.0
          %1431 = vmatprep.subr.mxu0 0.0
          %1432 = vmatpush1.xpose.msra.mxu0 0.0
          %1433 = vmatprep.subr.mxu0 0.0
          %1434 = vmatpush1.xpose.msra.mxu0 0.0
          %1435 = vmatprep.subr.mxu0 0.0
          %1436 = vmatpush1.xpose.msra.mxu0 0.0
          %1437 = vmatprep.subr.mxu0 0.0
          %1438 = vmatpush1.xpose.msra.mxu0 0.0
          %1439 = vmatprep.subr.mxu0 0.0
          %1440 = vmatpush1.xpose.msra.mxu0 0.0
          %1441 = vmatprep.subr.mxu0 0.0
          %1442 = vmatpush1.xpose.msra.mxu0 0.0
          %1443 = vmatprep.subr.mxu0 0.0
          %1444 = vmatpush1.xpose.msra.mxu0 0.0
          %1445 = vmatprep.subr.mxu0 0.0
          %1446 = vmatpush1.xpose.msra.mxu0 0.0
          %1447 = vmatprep.subr.mxu0 0.0
          %1448 = vmatpush1.xpose.msra.mxu0 0.0
          %1449 = vmatprep.subr.mxu0 0.0
          %1450 = vmatpush1.xpose.msra.mxu0 0.0
          %1451 = vmatprep.subr.mxu0 0.0
          %1452 = vmatpush1.xpose.msra.mxu0 0.0
          %1453 = vmatprep.subr.mxu0 0.0
          %1454 = vmatpush1.xpose.msra.mxu0 0.0
          %1455 = vmatprep.subr.mxu0 0.0
          %1456 = vmatpush1.xpose.msra.mxu0 0.0
          %1457 = vmatprep.subr.mxu0 0.0
          %1458 = vmatpush1.xpose.msra.mxu0 0.0
          %1459 = vmatprep.subr.mxu0 0.0
          %1460 = vmatpush1.xpose.msra.mxu0 0.0
          %1461 = vmatprep.subr.mxu0 0.0
          %1462 = vmatpush1.xpose.msra.mxu0 0.0
          %1463 = vmatprep.subr.mxu0 0.0
          %1464 = vmatpush1.xpose.msra.mxu0 0.0
          %1465 = vmatprep.mubr.f32.mxu0 0.0
          %1466 = vmatmul.mubr.f32.gmra.mrb[0].mxu0 %v1396
          %v1467 = vpop.f32.mrb[0].mxu0
          %v1468 = vadd.f32 0.0, %v1467
          %v1469 = vpop.f32.mrb[0].mxu0
          %1470 = vdwg.mxu0
          %v1472 = vsel %vm1242, %v1241, 0
          %v1475 = vsel %vm1242, %v939, 0
          %1477 = vmatprep.subr.mxu0 0.0
          %1478 = vmatpush1.xpose.msra.mxu0 %v1475
          %1479 = vmatprep.subr.mxu0 0.0
          %1480 = vmatpush1.xpose.msra.mxu0 0.0
          %1481 = vmatprep.subr.mxu0 0.0
          %1482 = vmatpush1.xpose.msra.mxu0 0.0
          %1483 = vmatprep.subr.mxu0 0.0
          %1484 = vmatpush1.xpose.msra.mxu0 0.0
          %1485 = vmatprep.subr.mxu0 0.0
          %1486 = vmatpush1.xpose.msra.mxu0 0.0
          %1487 = vmatprep.subr.mxu0 0.0
          %1488 = vmatpush1.xpose.msra.mxu0 0.0
          %1489 = vmatprep.subr.mxu0 0.0
          %1490 = vmatpush1.xpose.msra.mxu0 0.0
          %1491 = vmatprep.subr.mxu0 0.0
          %1492 = vmatpush1.xpose.msra.mxu0 0.0
          %1493 = vmatprep.subr.mxu0 0.0
          %1494 = vmatpush1.xpose.msra.mxu0 0.0
          %1495 = vmatprep.subr.mxu0 0.0
          %1496 = vmatpush1.xpose.msra.mxu0 0.0
          %1497 = vmatprep.subr.mxu0 0.0
          %1498 = vmatpush1.xpose.msra.mxu0 0.0
          %1499 = vmatprep.subr.mxu0 0.0
          %1500 = vmatpush1.xpose.msra.mxu0 0.0
          %1501 = vmatprep.subr.mxu0 0.0
          %1502 = vmatpush1.xpose.msra.mxu0 0.0
          %1503 = vmatprep.subr.mxu0 0.0
          %1504 = vmatpush1.xpose.msra.mxu0 0.0
          %1505 = vmatprep.subr.mxu0 0.0
          %1506 = vmatpush1.xpose.msra.mxu0 0.0
          %1507 = vmatprep.subr.mxu0 0.0
          %1508 = vmatpush1.xpose.msra.mxu0 0.0
          %1509 = vmatprep.subr.mxu0 0.0
          %1510 = vmatpush1.xpose.msra.mxu0 0.0
          %1511 = vmatprep.subr.mxu0 0.0
          %1512 = vmatpush1.xpose.msra.mxu0 0.0
          %1513 = vmatprep.subr.mxu0 0.0
          %1514 = vmatpush1.xpose.msra.mxu0 0.0
          %1515 = vmatprep.subr.mxu0 0.0
          %1516 = vmatpush1.xpose.msra.mxu0 0.0
          %1517 = vmatprep.subr.mxu0 0.0
          %1518 = vmatpush1.xpose.msra.mxu0 0.0
          %1519 = vmatprep.subr.mxu0 0.0
          %1520 = vmatpush1.xpose.msra.mxu0 0.0
          %1521 = vmatprep.subr.mxu0 0.0
          %1522 = vmatpush1.xpose.msra.mxu0 0.0
          %1523 = vmatprep.subr.mxu0 0.0
          %1524 = vmatpush1.xpose.msra.mxu0 0.0
          %1525 = vmatprep.subr.mxu0 0.0
          %1526 = vmatpush1.xpose.msra.mxu0 0.0
          %1527 = vmatprep.subr.mxu0 0.0
          %1528 = vmatpush1.xpose.msra.mxu0 0.0
          %1529 = vmatprep.subr.mxu0 0.0
          %1530 = vmatpush1.xpose.msra.mxu0 0.0
          %1531 = vmatprep.subr.mxu0 0.0
          %1532 = vmatpush1.xpose.msra.mxu0 0.0
          %1533 = vmatprep.subr.mxu0 0.0
          %1534 = vmatpush1.xpose.msra.mxu0 0.0
          %1535 = vmatprep.subr.mxu0 0.0
          %1536 = vmatpush1.xpose.msra.mxu0 0.0
          %1537 = vmatprep.subr.mxu0 0.0
          %1538 = vmatpush1.xpose.msra.mxu0 0.0
          %1539 = vmatprep.subr.mxu0 0.0
          %1540 = vmatpush1.xpose.msra.mxu0 0.0
          %1541 = vmatprep.mubr.f32.mxu0 0.0
          %1542 = vmatmul.mubr.f32.gmra.mrb[0].mxu0 %v1472
          %v1543 = vpop.f32.mrb[0].mxu0
          %v1544 = vadd.f32 0.0, %v1543
          %v1545 = vpop.f32.mrb[0].mxu0
          %1546 = vdwg.mxu0
          %v1547 = vlaneseq
          %v1548 = vshrl.u32 %v1547, 7
          %v1549 = vstv %s307
          %v1550 = vadd.s32 %v1549, %v1548
          %v1551 = vlaneseq
          %v1552 = vand.u32 %v1551, 127
          %v1553 = vstv %s308
          %v1554 = vadd.s32 %v1553, %v1552
          %vm1555 = vcmp.le.s32.totalorder %v1554, %v1550
          %v1556 = vsel %vm1555, 1, 0
          %vm1557 = vcmp.eq.s32.totalorder %v1556, 1
          %v1558 = vsel %vm1557, %v1316, -inf
          %v1559 = vsel %vm1557, %v1392, -inf
          %v1560 = vsel %vm1557, %v1468, -inf
          %v1561 = vsel %vm1557, %v1544, -inf
          %v1562 = vld [vmem:[#allocation3] sm:$0xff]
          %v1563 = vld [vmem:[#allocation3 + $0x8] sm:$0xff]
          %v1564 = vld [vmem:[#allocation3 + $0x10] sm:$0xff]
          %v1565 = vld [vmem:[#allocation3 + $0x18] sm:$0xff]
          %v1566 = vsel %vm1242, %v1558, -inf
          %1567 = vmax.xlane.f32.xlu0 %v1566
          %v1568 = vpop.xlane.xlu0 %1567
          %v1569 = vsel %vm1242, %v1559, -inf
          %1570 = vmax.xlane.f32.xlu0 %v1569
          %v1571 = vpop.xlane.xlu0 %1570
          %v1572 = vsel %vm1242, %v1560, -inf
          %1573 = vmax.xlane.f32.xlu0 %v1572
          %v1574 = vpop.xlane.xlu0 %1573
          %v1575 = vsel %vm1242, %v1561, -inf
          %1576 = vmax.xlane.f32.xlu0 %v1575
          %v1577 = vpop.xlane.xlu0 %1576
          %v1578 = vmax.f32 %v1562, %v1568
          %v1579 = vmax.f32 %v1563, %v1571
          %v1580 = vmax.f32 %v1564, %v1574
          %v1581 = vmax.f32 %v1565, %v1577
          %v1582 = vsub.f32 %v1562, %v1578
          %v1583 = vsub.f32 %v1563, %v1579
          %v1584 = vsub.f32 %v1564, %v1580
          %v1585 = vsub.f32 %v1565, %v1581
          %v1586 = vmul.f32 %v1582, 1.442695
          %v1587 = vpow.pop %v1586
          %v1588 = vmul.f32 %v1583, 1.442695
          %v1589 = vpow.pop %v1588
          %v1590 = vmul.f32 %v1584, 1.442695
          %v1591 = vpow.pop %v1590
          %v1592 = vmul.f32 %v1585, 1.442695
          %v1593 = vpow.pop %v1592
          %1595 = vset.pattern.permute.xlu0 0
          %1596 = vperm.xlu0 %1595, %v1578
          %v1597 = vpop.permute.xlu0 %1596
          %1600 = vset.pattern.permute.xlu0 0
          %1601 = vperm.xlu0 %1600, %v1579
          %v1602 = vpop.permute.xlu0 %1601
          %1605 = vset.pattern.permute.xlu0 0
          %1606 = vperm.xlu0 %1605, %v1580
          %v1607 = vpop.permute.xlu0 %1606
          %1610 = vset.pattern.permute.xlu0 0
          %1611 = vperm.xlu0 %1610, %v1581
          %v1612 = vpop.permute.xlu0 %1611
          %v1614 = vsub.f32 %v1558, %v1597
          %v1615 = vsub.f32 %v1559, %v1602
          %v1616 = vsub.f32 %v1560, %v1607
          %v1617 = vsub.f32 %v1561, %v1612
          %v1618 = vmul.f32 %v1614, 1.442695
          %v1619 = vpow.pop %v1618
          %v1620 = vmul.f32 %v1615, 1.442695
          %v1621 = vpow.pop %v1620
          %v1622 = vmul.f32 %v1616, 1.442695
          %v1623 = vpow.pop %v1622
          %v1624 = vmul.f32 %v1617, 1.442695
          %v1625 = vpow.pop %v1624
          %v1626 = vld [vmem:[#allocation4] sm:$0xff]
          %v1627 = vld [vmem:[#allocation4 + $0x8] sm:$0xff]
          %v1628 = vld [vmem:[#allocation4 + $0x10] sm:$0xff]
          %v1629 = vld [vmem:[#allocation4 + $0x18] sm:$0xff]
          %v1630 = vmul.f32 %v1587, %v1626
          %v1631 = vmul.f32 %v1589, %v1627
          %v1632 = vmul.f32 %v1591, %v1628
          %v1633 = vmul.f32 %v1593, %v1629
          %v1634 = vsel %vm1242, %v1619, 0.0
          %1635 = vadd.xlane.f32.xlu0 %v1634
          %v1636 = vpop.xlane.xlu0 %1635
          %v1637 = vsel %vm1242, %v1621, 0.0
          %1638 = vadd.xlane.f32.xlu0 %v1637
          %v1639 = vpop.xlane.xlu0 %1638
          %v1640 = vsel %vm1242, %v1623, 0.0
          %1641 = vadd.xlane.f32.xlu0 %v1640
          %v1642 = vpop.xlane.xlu0 %1641
          %v1643 = vsel %vm1242, %v1625, 0.0
          %1644 = vadd.xlane.f32.xlu0 %v1643
          %v1645 = vpop.xlane.xlu0 %1644
          %v1646 = vadd.f32 %v1630, %v1636
          %v1647 = vadd.f32 %v1631, %v1639
          %v1648 = vadd.f32 %v1632, %v1642
          %v1649 = vadd.f32 %v1633, %v1645
          %vm1650 = vcmask 7168
          %1651 = vst.msk [vmem:[#allocation4] sm:$0xff] %vm1650, %v1646
          %1652 = vst.msk [vmem:[#allocation4 + $0x8] sm:$0xff] %vm1650, %v1647
          %1653 = vst.msk [vmem:[#allocation4 + $0x10] sm:$0xff] %vm1650, %v1648
          %1654 = vst.msk [vmem:[#allocation4 + $0x18] sm:$0xff] %vm1650, %v1649
          %v1655 = vld [vmem:[#allocation5] sm:$0xff]
          %v1656 = vld [vmem:[#allocation5 + $0x8] sm:$0xff]
          %v1657 = vld [vmem:[#allocation5 + $0x10] sm:$0xff]
          %v1658 = vld [vmem:[#allocation5 + $0x18] sm:$0xff]
          %1660 = vset.pattern.permute.xlu0 0
          %1661 = vperm.xlu0 %1660, %v1587
          %v1662 = vpop.permute.xlu0 %1661
          %1665 = vset.pattern.permute.xlu0 0
          %1666 = vperm.xlu0 %1665, %v1589
          %v1667 = vpop.permute.xlu0 %1666
          %1670 = vset.pattern.permute.xlu0 0
          %1671 = vperm.xlu0 %1670, %v1591
          %v1672 = vpop.permute.xlu0 %1671
          %1675 = vset.pattern.permute.xlu0 0
          %1676 = vperm.xlu0 %1675, %v1593
          %v1677 = vpop.permute.xlu0 %1676
          %v1679 = vmul.f32 %v1662, %v1655
          %v1680 = vmul.f32 %v1667, %v1656
          %v1681 = vmul.f32 %v1672, %v1657
          %v1682 = vmul.f32 %v1677, %v1658
          %v1684 = vsel %vm1242, %v1619, 0
          %1686 = vmatprep.subr.mxu0 0.0
          %1687 = vmatpush1.msra.mxu0 %v1025
          %1688 = vmatprep.subr.mxu0 0.0
          %1689 = vmatpush1.msra.mxu0 0.0
          %1690 = vmatprep.subr.mxu0 0.0
          %1691 = vmatpush1.msra.mxu0 0.0
          %1692 = vmatprep.subr.mxu0 0.0
          %1693 = vmatpush1.msra.mxu0 0.0
          %1694 = vmatprep.subr.mxu0 0.0
          %1695 = vmatpush1.msra.mxu0 0.0
          %1696 = vmatprep.subr.mxu0 0.0
          %1697 = vmatpush1.msra.mxu0 0.0
          %1698 = vmatprep.subr.mxu0 0.0
          %1699 = vmatpush1.msra.mxu0 0.0
          %1700 = vmatprep.subr.mxu0 0.0
          %1701 = vmatpush1.msra.mxu0 0.0
          %1702 = vmatprep.subr.mxu0 0.0
          %1703 = vmatpush1.msra.mxu0 0.0
          %1704 = vmatprep.subr.mxu0 0.0
          %1705 = vmatpush1.msra.mxu0 0.0
          %1706 = vmatprep.subr.mxu0 0.0
          %1707 = vmatpush1.msra.mxu0 0.0
          %1708 = vmatprep.subr.mxu0 0.0
          %1709 = vmatpush1.msra.mxu0 0.0
          %1710 = vmatprep.subr.mxu0 0.0
          %1711 = vmatpush1.msra.mxu0 0.0
          %1712 = vmatprep.subr.mxu0 0.0
          %1713 = vmatpush1.msra.mxu0 0.0
          %1714 = vmatprep.subr.mxu0 0.0
          %1715 = vmatpush1.msra.mxu0 0.0
          %1716 = vmatprep.subr.mxu0 0.0
          %1717 = vmatpush1.msra.mxu0 0.0
          %1718 = vmatprep.subr.mxu0 0.0
          %1719 = vmatpush1.msra.mxu0 0.0
          %1720 = vmatprep.subr.mxu0 0.0
          %1721 = vmatpush1.msra.mxu0 0.0
          %1722 = vmatprep.subr.mxu0 0.0
          %1723 = vmatpush1.msra.mxu0 0.0
          %1724 = vmatprep.subr.mxu0 0.0
          %1725 = vmatpush1.msra.mxu0 0.0
          %1726 = vmatprep.subr.mxu0 0.0
          %1727 = vmatpush1.msra.mxu0 0.0
          %1728 = vmatprep.subr.mxu0 0.0
          %1729 = vmatpush1.msra.mxu0 0.0
          %1730 = vmatprep.subr.mxu0 0.0
          %1731 = vmatpush1.msra.mxu0 0.0
          %1732 = vmatprep.subr.mxu0 0.0
          %1733 = vmatpush1.msra.mxu0 0.0
          %1734 = vmatprep.subr.mxu0 0.0
          %1735 = vmatpush1.msra.mxu0 0.0
          %1736 = vmatprep.subr.mxu0 0.0
          %1737 = vmatpush1.msra.mxu0 0.0
          %1738 = vmatprep.subr.mxu0 0.0
          %1739 = vmatpush1.msra.mxu0 0.0
          %1740 = vmatprep.subr.mxu0 0.0
          %1741 = vmatpush1.msra.mxu0 0.0
          %1742 = vmatprep.subr.mxu0 0.0
          %1743 = vmatpush1.msra.mxu0 0.0
          %1744 = vmatprep.subr.mxu0 0.0
          %1745 = vmatpush1.msra.mxu0 0.0
          %1746 = vmatprep.subr.mxu0 0.0
          %1747 = vmatpush1.msra.mxu0 0.0
          %1748 = vmatprep.subr.mxu0 0.0
          %1749 = vmatpush1.msra.mxu0 0.0
          %1750 = vmatprep.mubr.f32.mxu0 0.0
          %1751 = vmatmul.mubr.f32.gmra.mrb[0].mxu0 %v1684
          %v1752 = vpop.f32.mrb[0].mxu0
          %v1753 = vadd.f32 0.0, %v1752
          %v1754 = vpop.f32.mrb[0].mxu0
          %1755 = vdwg.mxu0
          %v1757 = vsel %vm1242, %v1621, 0
          %1759 = vmatprep.subr.mxu0 0.0
          %1760 = vmatpush1.msra.mxu0 %v1095
          %1761 = vmatprep.subr.mxu0 0.0
          %1762 = vmatpush1.msra.mxu0 0.0
          %1763 = vmatprep.subr.mxu0 0.0
          %1764 = vmatpush1.msra.mxu0 0.0
          %1765 = vmatprep.subr.mxu0 0.0
          %1766 = vmatpush1.msra.mxu0 0.0
          %1767 = vmatprep.subr.mxu0 0.0
          %1768 = vmatpush1.msra.mxu0 0.0
          %1769 = vmatprep.subr.mxu0 0.0
          %1770 = vmatpush1.msra.mxu0 0.0
          %1771 = vmatprep.subr.mxu0 0.0
          %1772 = vmatpush1.msra.mxu0 0.0
          %1773 = vmatprep.subr.mxu0 0.0
          %1774 = vmatpush1.msra.mxu0 0.0
          %1775 = vmatprep.subr.mxu0 0.0
          %1776 = vmatpush1.msra.mxu0 0.0
          %1777 = vmatprep.subr.mxu0 0.0
          %1778 = vmatpush1.msra.mxu0 0.0
          %1779 = vmatprep.subr.mxu0 0.0
          %1780 = vmatpush1.msra.mxu0 0.0
          %1781 = vmatprep.subr.mxu0 0.0
          %1782 = vmatpush1.msra.mxu0 0.0
          %1783 = vmatprep.subr.mxu0 0.0
          %1784 = vmatpush1.msra.mxu0 0.0
          %1785 = vmatprep.subr.mxu0 0.0
          %1786 = vmatpush1.msra.mxu0 0.0
          %1787 = vmatprep.subr.mxu0 0.0
          %1788 = vmatpush1.msra.mxu0 0.0
          %1789 = vmatprep.subr.mxu0 0.0
          %1790 = vmatpush1.msra.mxu0 0.0
          %1791 = vmatprep.subr.mxu0 0.0
          %1792 = vmatpush1.msra.mxu0 0.0
          %1793 = vmatprep.subr.mxu0 0.0
          %1794 = vmatpush1.msra.mxu0 0.0
          %1795 = vmatprep.subr.mxu0 0.0
          %1796 = vmatpush1.msra.mxu0 0.0
          %1797 = vmatprep.subr.mxu0 0.0
          %1798 = vmatpush1.msra.mxu0 0.0
          %1799 = vmatprep.subr.mxu0 0.0
          %1800 = vmatpush1.msra.mxu0 0.0
          %1801 = vmatprep.subr.mxu0 0.0
          %1802 = vmatpush1.msra.mxu0 0.0
          %1803 = vmatprep.subr.mxu0 0.0
          %1804 = vmatpush1.msra.mxu0 0.0
          %1805 = vmatprep.subr.mxu0 0.0
          %1806 = vmatpush1.msra.mxu0 0.0
          %1807 = vmatprep.subr.mxu0 0.0
          %1808 = vmatpush1.msra.mxu0 0.0
          %1809 = vmatprep.subr.mxu0 0.0
          %1810 = vmatpush1.msra.mxu0 0.0
          %1811 = vmatprep.subr.mxu0 0.0
          %1812 = vmatpush1.msra.mxu0 0.0
          %1813 = vmatprep.subr.mxu0 0.0
          %1814 = vmatpush1.msra.mxu0 0.0
          %1815 = vmatprep.subr.mxu0 0.0
          %1816 = vmatpush1.msra.mxu0 0.0
          %1817 = vmatprep.subr.mxu0 0.0
          %1818 = vmatpush1.msra.mxu0 0.0
          %1819 = vmatprep.subr.mxu0 0.0
          %1820 = vmatpush1.msra.mxu0 0.0
          %1821 = vmatprep.subr.mxu0 0.0
          %1822 = vmatpush1.msra.mxu0 0.0
          %1823 = vmatprep.mubr.f32.mxu0 0.0
          %1824 = vmatmul.mubr.f32.gmra.mrb[0].mxu0 %v1757
          %v1825 = vpop.f32.mrb[0].mxu0
          %v1826 = vadd.f32 0.0, %v1825
          %v1827 = vpop.f32.mrb[0].mxu0
          %1828 = vdwg.mxu0
          %v1830 = vsel %vm1242, %v1623, 0
          %1832 = vmatprep.subr.mxu0 0.0
          %1833 = vmatpush1.msra.mxu0 %v1165
          %1834 = vmatprep.subr.mxu0 0.0
          %1835 = vmatpush1.msra.mxu0 0.0
          %1836 = vmatprep.subr.mxu0 0.0
          %1837 = vmatpush1.msra.mxu0 0.0
          %1838 = vmatprep.subr.mxu0 0.0
          %1839 = vmatpush1.msra.mxu0 0.0
          %1840 = vmatprep.subr.mxu0 0.0
          %1841 = vmatpush1.msra.mxu0 0.0
          %1842 = vmatprep.subr.mxu0 0.0
          %1843 = vmatpush1.msra.mxu0 0.0
          %1844 = vmatprep.subr.mxu0 0.0
          %1845 = vmatpush1.msra.mxu0 0.0
          %1846 = vmatprep.subr.mxu0 0.0
          %1847 = vmatpush1.msra.mxu0 0.0
          %1848 = vmatprep.subr.mxu0 0.0
          %1849 = vmatpush1.msra.mxu0 0.0
          %1850 = vmatprep.subr.mxu0 0.0
          %1851 = vmatpush1.msra.mxu0 0.0
          %1852 = vmatprep.subr.mxu0 0.0
          %1853 = vmatpush1.msra.mxu0 0.0
          %1854 = vmatprep.subr.mxu0 0.0
          %1855 = vmatpush1.msra.mxu0 0.0
          %1856 = vmatprep.subr.mxu0 0.0
          %1857 = vmatpush1.msra.mxu0 0.0
          %1858 = vmatprep.subr.mxu0 0.0
          %1859 = vmatpush1.msra.mxu0 0.0
          %1860 = vmatprep.subr.mxu0 0.0
          %1861 = vmatpush1.msra.mxu0 0.0
          %1862 = vmatprep.subr.mxu0 0.0
          %1863 = vmatpush1.msra.mxu0 0.0
          %1864 = vmatprep.subr.mxu0 0.0
          %1865 = vmatpush1.msra.mxu0 0.0
          %1866 = vmatprep.subr.mxu0 0.0
          %1867 = vmatpush1.msra.mxu0 0.0
          %1868 = vmatprep.subr.mxu0 0.0
          %1869 = vmatpush1.msra.mxu0 0.0
          %1870 = vmatprep.subr.mxu0 0.0
          %1871 = vmatpush1.msra.mxu0 0.0
          %1872 = vmatprep.subr.mxu0 0.0
          %1873 = vmatpush1.msra.mxu0 0.0
          %1874 = vmatprep.subr.mxu0 0.0
          %1875 = vmatpush1.msra.mxu0 0.0
          %1876 = vmatprep.subr.mxu0 0.0
          %1877 = vmatpush1.msra.mxu0 0.0
          %1878 = vmatprep.subr.mxu0 0.0
          %1879 = vmatpush1.msra.mxu0 0.0
          %1880 = vmatprep.subr.mxu0 0.0
          %1881 = vmatpush1.msra.mxu0 0.0
          %1882 = vmatprep.subr.mxu0 0.0
          %1883 = vmatpush1.msra.mxu0 0.0
          %1884 = vmatprep.subr.mxu0 0.0
          %1885 = vmatpush1.msra.mxu0 0.0
          %1886 = vmatprep.subr.mxu0 0.0
          %1887 = vmatpush1.msra.mxu0 0.0
          %1888 = vmatprep.subr.mxu0 0.0
          %1889 = vmatpush1.msra.mxu0 0.0
          %1890 = vmatprep.subr.mxu0 0.0
          %1891 = vmatpush1.msra.mxu0 0.0
          %1892 = vmatprep.subr.mxu0 0.0
          %1893 = vmatpush1.msra.mxu0 0.0
          %1894 = vmatprep.subr.mxu0 0.0
          %1895 = vmatpush1.msra.mxu0 0.0
          %1896 = vmatprep.mubr.f32.mxu0 0.0
          %1897 = vmatmul.mubr.f32.gmra.mrb[0].mxu0 %v1830
          %v1898 = vpop.f32.mrb[0].mxu0
          %v1899 = vadd.f32 0.0, %v1898
          %v1900 = vpop.f32.mrb[0].mxu0
          %1901 = vdwg.mxu0
          %v1903 = vsel %vm1242, %v1625, 0
          %1905 = vmatprep.subr.mxu0 0.0
          %1906 = vmatpush1.msra.mxu0 %v1235
          %1907 = vmatprep.subr.mxu0 0.0
          %1908 = vmatpush1.msra.mxu0 0.0
          %1909 = vmatprep.subr.mxu0 0.0
          %1910 = vmatpush1.msra.mxu0 0.0
          %1911 = vmatprep.subr.mxu0 0.0
          %1912 = vmatpush1.msra.mxu0 0.0
          %1913 = vmatprep.subr.mxu0 0.0
          %1914 = vmatpush1.msra.mxu0 0.0
          %1915 = vmatprep.subr.mxu0 0.0
          %1916 = vmatpush1.msra.mxu0 0.0
          %1917 = vmatprep.subr.mxu0 0.0
          %1918 = vmatpush1.msra.mxu0 0.0
          %1919 = vmatprep.subr.mxu0 0.0
          %1920 = vmatpush1.msra.mxu0 0.0
          %1921 = vmatprep.subr.mxu0 0.0
          %1922 = vmatpush1.msra.mxu0 0.0
          %1923 = vmatprep.subr.mxu0 0.0
          %1924 = vmatpush1.msra.mxu0 0.0
          %1925 = vmatprep.subr.mxu0 0.0
          %1926 = vmatpush1.msra.mxu0 0.0
          %1927 = vmatprep.subr.mxu0 0.0
          %1928 = vmatpush1.msra.mxu0 0.0
          %1929 = vmatprep.subr.mxu0 0.0
          %1930 = vmatpush1.msra.mxu0 0.0
          %1931 = vmatprep.subr.mxu0 0.0
          %1932 = vmatpush1.msra.mxu0 0.0
          %1933 = vmatprep.subr.mxu0 0.0
          %1934 = vmatpush1.msra.mxu0 0.0
          %1935 = vmatprep.subr.mxu0 0.0
          %1936 = vmatpush1.msra.mxu0 0.0
          %1937 = vmatprep.subr.mxu0 0.0
          %1938 = vmatpush1.msra.mxu0 0.0
          %1939 = vmatprep.subr.mxu0 0.0
          %1940 = vmatpush1.msra.mxu0 0.0
          %1941 = vmatprep.subr.mxu0 0.0
          %1942 = vmatpush1.msra.mxu0 0.0
          %1943 = vmatprep.subr.mxu0 0.0
          %1944 = vmatpush1.msra.mxu0 0.0
          %1945 = vmatprep.subr.mxu0 0.0
          %1946 = vmatpush1.msra.mxu0 0.0
          %1947 = vmatprep.subr.mxu0 0.0
          %1948 = vmatpush1.msra.mxu0 0.0
          %1949 = vmatprep.subr.mxu0 0.0
          %1950 = vmatpush1.msra.mxu0 0.0
          %1951 = vmatprep.subr.mxu0 0.0
          %1952 = vmatpush1.msra.mxu0 0.0
          %1953 = vmatprep.subr.mxu0 0.0
          %1954 = vmatpush1.msra.mxu0 0.0
          %1955 = vmatprep.subr.mxu0 0.0
          %1956 = vmatpush1.msra.mxu0 0.0
          %1957 = vmatprep.subr.mxu0 0.0
          %1958 = vmatpush1.msra.mxu0 0.0
          %1959 = vmatprep.subr.mxu0 0.0
          %1960 = vmatpush1.msra.mxu0 0.0
          %1961 = vmatprep.subr.mxu0 0.0
          %1962 = vmatpush1.msra.mxu0 0.0
          %1963 = vmatprep.subr.mxu0 0.0
          %1964 = vmatpush1.msra.mxu0 0.0
          %1965 = vmatprep.subr.mxu0 0.0
          %1966 = vmatpush1.msra.mxu0 0.0
          %1967 = vmatprep.subr.mxu0 0.0
          %1968 = vmatpush1.msra.mxu0 0.0
          %1969 = vmatprep.mubr.f32.mxu0 0.0
          %1970 = vmatmul.mubr.f32.gmra.mrb[0].mxu0 %v1903
          %v1971 = vpop.f32.mrb[0].mxu0
          %v1972 = vadd.f32 0.0, %v1971
          %v1973 = vpop.f32.mrb[0].mxu0
          %1974 = vdwg.mxu0
          %v1975 = vadd.f32 %v1679, %v1753
          %v1976 = vadd.f32 %v1680, %v1826
          %v1977 = vadd.f32 %v1681, %v1899
          %v1978 = vadd.f32 %v1682, %v1972
          %1979 = vst.msk [vmem:[#allocation5] sm:$0xff] %vm1242, %v1975
          %1980 = vst.msk [vmem:[#allocation5 + $0x8] sm:$0xff] %vm1242, %v1976
          %1981 = vst.msk [vmem:[#allocation5 + $0x10] sm:$0xff] %vm1242, %v1977
          %1982 = vst.msk [vmem:[#allocation5 + $0x18] sm:$0xff] %vm1242, %v1978
          %1983 = vst.msk [vmem:[#allocation3] sm:$0xff] %vm1650, %v1578
          %1984 = vst.msk [vmem:[#allocation3 + $0x8] sm:$0xff] %vm1650, %v1579
          %1985 = vst.msk [vmem:[#allocation3 + $0x10] sm:$0xff] %vm1650, %v1580
          %1986 = vst.msk [vmem:[#allocation3 + $0x18] sm:$0xff] %vm1650, %v1581
        $region52: #{tpu_custom_call.1} parent=43 // pred_fallthru
          _
        // Predicated region
        $region53: #{tpu_custom_call.1} parent=43 // pred_check
          %p1987 = pneg %p309
        $region54: #{tpu_custom_call.1} parent=43 // pred_check_branch
          %1989 = sbr.rel (%p1987) target = $region56
        $region55: #{tpu_custom_call.1} parent=43 // pred_region
          %v1990 = vld [vmem:[#allocation5] sm:$0xff]
          %v1991 = vld [vmem:[#allocation5 + $0x8] sm:$0xff]
          %v1992 = vld [vmem:[#allocation5 + $0x10] sm:$0xff]
          %v1993 = vld [vmem:[#allocation5 + $0x18] sm:$0xff]
          %v1994 = vld [vmem:[#allocation4] sm:$0xff]
          %v1995 = vld [vmem:[#allocation4 + $0x8] sm:$0xff]
          %v1996 = vld [vmem:[#allocation4 + $0x10] sm:$0xff]
          %v1997 = vld [vmem:[#allocation4 + $0x18] sm:$0xff]
          %v1998 = vrcp.pop %v1994
          %v1999 = vrcp.pop %v1995
          %v2000 = vrcp.pop %v1996
          %v2001 = vrcp.pop %v1997
          %2003 = vset.pattern.permute.xlu0 0
          %2004 = vperm.xlu0 %2003, %v1998
          %v2005 = vpop.permute.xlu0 %2004
          %2008 = vset.pattern.permute.xlu0 0
          %2009 = vperm.xlu0 %2008, %v1999
          %v2010 = vpop.permute.xlu0 %2009
          %2013 = vset.pattern.permute.xlu0 0
          %2014 = vperm.xlu0 %2013, %v2000
          %v2015 = vpop.permute.xlu0 %2014
          %2018 = vset.pattern.permute.xlu0 0
          %2019 = vperm.xlu0 %2018, %v2001
          %v2020 = vpop.permute.xlu0 %2019
          %v2022 = vmul.f32 %v1990, %v2005
          %v2023 = vmul.f32 %v1991, %v2010
          %v2024 = vmul.f32 %v1992, %v2015
          %v2025 = vmul.f32 %v1993, %v2020
          %v2026 = vld [vmem:[%s5] sm:$0xff]
          %v2027 = vld [vmem:[%s5 + $0x8] sm:$0xff]
          %v2028 = vld [vmem:[%s5 + $0x10] sm:$0xff]
          %v2029 = vld [vmem:[%s5 + $0x18] sm:$0xff]
          %vm2030 = vcmask 64512
          %v2032 = vsel %vm2030, %v2022, 0
          %2034 = vmatprep.subr.mxu0 0.0
          %2035 = vmatpush1.msra.mxu0 %v2026
          %2036 = vmatprep.subr.mxu0 0.0
          %2037 = vmatpush1.msra.mxu0 0.0
          %2038 = vmatprep.subr.mxu0 0.0
          %2039 = vmatpush1.msra.mxu0 0.0
          %2040 = vmatprep.subr.mxu0 0.0
          %2041 = vmatpush1.msra.mxu0 0.0
          %2042 = vmatprep.subr.mxu0 0.0
          %2043 = vmatpush1.msra.mxu0 0.0
          %2044 = vmatprep.subr.mxu0 0.0
          %2045 = vmatpush1.msra.mxu0 0.0
          %2046 = vmatprep.subr.mxu0 0.0
          %2047 = vmatpush1.msra.mxu0 0.0
          %2048 = vmatprep.subr.mxu0 0.0
          %2049 = vmatpush1.msra.mxu0 0.0
          %2050 = vmatprep.subr.mxu0 0.0
          %2051 = vmatpush1.msra.mxu0 0.0
          %2052 = vmatprep.subr.mxu0 0.0
          %2053 = vmatpush1.msra.mxu0 0.0
          %2054 = vmatprep.subr.mxu0 0.0
          %2055 = vmatpush1.msra.mxu0 0.0
          %2056 = vmatprep.subr.mxu0 0.0
          %2057 = vmatpush1.msra.mxu0 0.0
          %2058 = vmatprep.subr.mxu0 0.0
          %2059 = vmatpush1.msra.mxu0 0.0
          %2060 = vmatprep.subr.mxu0 0.0
          %2061 = vmatpush1.msra.mxu0 0.0
          %2062 = vmatprep.subr.mxu0 0.0
          %2063 = vmatpush1.msra.mxu0 0.0
          %2064 = vmatprep.subr.mxu0 0.0
          %2065 = vmatpush1.msra.mxu0 0.0
          %2066 = vmatprep.subr.mxu0 0.0
          %2067 = vmatpush1.msra.mxu0 0.0
          %2068 = vmatprep.subr.mxu0 0.0
          %2069 = vmatpush1.msra.mxu0 0.0
          %2070 = vmatprep.subr.mxu0 0.0
          %2071 = vmatpush1.msra.mxu0 0.0
          %2072 = vmatprep.subr.mxu0 0.0
          %2073 = vmatpush1.msra.mxu0 0.0
          %2074 = vmatprep.subr.mxu0 0.0
          %2075 = vmatpush1.msra.mxu0 0.0
          %2076 = vmatprep.subr.mxu0 0.0
          %2077 = vmatpush1.msra.mxu0 0.0
          %2078 = vmatprep.subr.mxu0 0.0
          %2079 = vmatpush1.msra.mxu0 0.0
          %2080 = vmatprep.subr.mxu0 0.0
          %2081 = vmatpush1.msra.mxu0 0.0
          %2082 = vmatprep.subr.mxu0 0.0
          %2083 = vmatpush1.msra.mxu0 0.0
          %2084 = vmatprep.subr.mxu0 0.0
          %2085 = vmatpush1.msra.mxu0 0.0
          %2086 = vmatprep.subr.mxu0 0.0
          %2087 = vmatpush1.msra.mxu0 0.0
          %2088 = vmatprep.subr.mxu0 0.0
          %2089 = vmatpush1.msra.mxu0 0.0
          %2090 = vmatprep.subr.mxu0 0.0
          %2091 = vmatpush1.msra.mxu0 0.0
          %2092 = vmatprep.subr.mxu0 0.0
          %2093 = vmatpush1.msra.mxu0 0.0
          %2094 = vmatprep.subr.mxu0 0.0
          %2095 = vmatpush1.msra.mxu0 0.0
          %2096 = vmatprep.subr.mxu0 0.0
          %2097 = vmatpush1.msra.mxu0 0.0
          %2098 = vmatprep.mubr.f32.mxu0 0.0
          %2099 = vmatmul.mubr.f32.gmra.mrb[0].mxu0 %v2032
          %v2100 = vpop.f32.mrb[0].mxu0
          %v2101 = vadd.f32 0.0, %v2100
          %v2102 = vpop.f32.mrb[0].mxu0
          %2103 = vdwg.mxu0
          %v2105 = vsel %vm2030, %v2023, 0
          %2107 = vmatprep.subr.mxu0 0.0
          %2108 = vmatpush1.msra.mxu0 %v2027
          %2109 = vmatprep.subr.mxu0 0.0
          %2110 = vmatpush1.msra.mxu0 0.0
          %2111 = vmatprep.subr.mxu0 0.0
          %2112 = vmatpush1.msra.mxu0 0.0
          %2113 = vmatprep.subr.mxu0 0.0
          %2114 = vmatpush1.msra.mxu0 0.0
          %2115 = vmatprep.subr.mxu0 0.0
          %2116 = vmatpush1.msra.mxu0 0.0
          %2117 = vmatprep.subr.mxu0 0.0
          %2118 = vmatpush1.msra.mxu0 0.0
          %2119 = vmatprep.subr.mxu0 0.0
          %2120 = vmatpush1.msra.mxu0 0.0
          %2121 = vmatprep.subr.mxu0 0.0
          %2122 = vmatpush1.msra.mxu0 0.0
          %2123 = vmatprep.subr.mxu0 0.0
          %2124 = vmatpush1.msra.mxu0 0.0
          %2125 = vmatprep.subr.mxu0 0.0
          %2126 = vmatpush1.msra.mxu0 0.0
          %2127 = vmatprep.subr.mxu0 0.0
          %2128 = vmatpush1.msra.mxu0 0.0
          %2129 = vmatprep.subr.mxu0 0.0
          %2130 = vmatpush1.msra.mxu0 0.0
          %2131 = vmatprep.subr.mxu0 0.0
          %2132 = vmatpush1.msra.mxu0 0.0
          %2133 = vmatprep.subr.mxu0 0.0
          %2134 = vmatpush1.msra.mxu0 0.0
          %2135 = vmatprep.subr.mxu0 0.0
          %2136 = vmatpush1.msra.mxu0 0.0
          %2137 = vmatprep.subr.mxu0 0.0
          %2138 = vmatpush1.msra.mxu0 0.0
          %2139 = vmatprep.subr.mxu0 0.0
          %2140 = vmatpush1.msra.mxu0 0.0
          %2141 = vmatprep.subr.mxu0 0.0
          %2142 = vmatpush1.msra.mxu0 0.0
          %2143 = vmatprep.subr.mxu0 0.0
          %2144 = vmatpush1.msra.mxu0 0.0
          %2145 = vmatprep.subr.mxu0 0.0
          %2146 = vmatpush1.msra.mxu0 0.0
          %2147 = vmatprep.subr.mxu0 0.0
          %2148 = vmatpush1.msra.mxu0 0.0
          %2149 = vmatprep.subr.mxu0 0.0
          %2150 = vmatpush1.msra.mxu0 0.0
          %2151 = vmatprep.subr.mxu0 0.0
          %2152 = vmatpush1.msra.mxu0 0.0
          %2153 = vmatprep.subr.mxu0 0.0
          %2154 = vmatpush1.msra.mxu0 0.0
          %2155 = vmatprep.subr.mxu0 0.0
          %2156 = vmatpush1.msra.mxu0 0.0
          %2157 = vmatprep.subr.mxu0 0.0
          %2158 = vmatpush1.msra.mxu0 0.0
          %2159 = vmatprep.subr.mxu0 0.0
          %2160 = vmatpush1.msra.mxu0 0.0
          %2161 = vmatprep.subr.mxu0 0.0
          %2162 = vmatpush1.msra.mxu0 0.0
          %2163 = vmatprep.subr.mxu0 0.0
          %2164 = vmatpush1.msra.mxu0 0.0
          %2165 = vmatprep.subr.mxu0 0.0
          %2166 = vmatpush1.msra.mxu0 0.0
          %2167 = vmatprep.subr.mxu0 0.0
          %2168 = vmatpush1.msra.mxu0 0.0
          %2169 = vmatprep.subr.mxu0 0.0
          %2170 = vmatpush1.msra.mxu0 0.0
          %2171 = vmatprep.mubr.f32.mxu0 0.0
          %2172 = vmatmul.mubr.f32.gmra.mrb[0].mxu0 %v2105
          %v2173 = vpop.f32.mrb[0].mxu0
          %v2174 = vadd.f32 0.0, %v2173
          %v2175 = vpop.f32.mrb[0].mxu0
          %2176 = vdwg.mxu0
          %v2178 = vsel %vm2030, %v2024, 0
          %2180 = vmatprep.subr.mxu0 0.0
          %2181 = vmatpush1.msra.mxu0 %v2028
          %2182 = vmatprep.subr.mxu0 0.0
          %2183 = vmatpush1.msra.mxu0 0.0
          %2184 = vmatprep.subr.mxu0 0.0
          %2185 = vmatpush1.msra.mxu0 0.0
          %2186 = vmatprep.subr.mxu0 0.0
          %2187 = vmatpush1.msra.mxu0 0.0
          %2188 = vmatprep.subr.mxu0 0.0
          %2189 = vmatpush1.msra.mxu0 0.0
          %2190 = vmatprep.subr.mxu0 0.0
          %2191 = vmatpush1.msra.mxu0 0.0
          %2192 = vmatprep.subr.mxu0 0.0
          %2193 = vmatpush1.msra.mxu0 0.0
          %2194 = vmatprep.subr.mxu0 0.0
          %2195 = vmatpush1.msra.mxu0 0.0
          %2196 = vmatprep.subr.mxu0 0.0
          %2197 = vmatpush1.msra.mxu0 0.0
          %2198 = vmatprep.subr.mxu0 0.0
          %2199 = vmatpush1.msra.mxu0 0.0
          %2200 = vmatprep.subr.mxu0 0.0
          %2201 = vmatpush1.msra.mxu0 0.0
          %2202 = vmatprep.subr.mxu0 0.0
          %2203 = vmatpush1.msra.mxu0 0.0
          %2204 = vmatprep.subr.mxu0 0.0
          %2205 = vmatpush1.msra.mxu0 0.0
          %2206 = vmatprep.subr.mxu0 0.0
          %2207 = vmatpush1.msra.mxu0 0.0
          %2208 = vmatprep.subr.mxu0 0.0
          %2209 = vmatpush1.msra.mxu0 0.0
          %2210 = vmatprep.subr.mxu0 0.0
          %2211 = vmatpush1.msra.mxu0 0.0
          %2212 = vmatprep.subr.mxu0 0.0
          %2213 = vmatpush1.msra.mxu0 0.0
          %2214 = vmatprep.subr.mxu0 0.0
          %2215 = vmatpush1.msra.mxu0 0.0
          %2216 = vmatprep.subr.mxu0 0.0
          %2217 = vmatpush1.msra.mxu0 0.0
          %2218 = vmatprep.subr.mxu0 0.0
          %2219 = vmatpush1.msra.mxu0 0.0
          %2220 = vmatprep.subr.mxu0 0.0
          %2221 = vmatpush1.msra.mxu0 0.0
          %2222 = vmatprep.subr.mxu0 0.0
          %2223 = vmatpush1.msra.mxu0 0.0
          %2224 = vmatprep.subr.mxu0 0.0
          %2225 = vmatpush1.msra.mxu0 0.0
          %2226 = vmatprep.subr.mxu0 0.0
          %2227 = vmatpush1.msra.mxu0 0.0
          %2228 = vmatprep.subr.mxu0 0.0
          %2229 = vmatpush1.msra.mxu0 0.0
          %2230 = vmatprep.subr.mxu0 0.0
          %2231 = vmatpush1.msra.mxu0 0.0
          %2232 = vmatprep.subr.mxu0 0.0
          %2233 = vmatpush1.msra.mxu0 0.0
          %2234 = vmatprep.subr.mxu0 0.0
          %2235 = vmatpush1.msra.mxu0 0.0
          %2236 = vmatprep.subr.mxu0 0.0
          %2237 = vmatpush1.msra.mxu0 0.0
          %2238 = vmatprep.subr.mxu0 0.0
          %2239 = vmatpush1.msra.mxu0 0.0
          %2240 = vmatprep.subr.mxu0 0.0
          %2241 = vmatpush1.msra.mxu0 0.0
          %2242 = vmatprep.subr.mxu0 0.0
          %2243 = vmatpush1.msra.mxu0 0.0
          %2244 = vmatprep.mubr.f32.mxu0 0.0
          %2245 = vmatmul.mubr.f32.gmra.mrb[0].mxu0 %v2178
          %v2246 = vpop.f32.mrb[0].mxu0
          %v2247 = vadd.f32 0.0, %v2246
          %v2248 = vpop.f32.mrb[0].mxu0
          %2249 = vdwg.mxu0
          %v2251 = vsel %vm2030, %v2025, 0
          %2253 = vmatprep.subr.mxu0 0.0
          %2254 = vmatpush1.msra.mxu0 %v2029
          %2255 = vmatprep.subr.mxu0 0.0
          %2256 = vmatpush1.msra.mxu0 0.0
          %2257 = vmatprep.subr.mxu0 0.0
          %2258 = vmatpush1.msra.mxu0 0.0
          %2259 = vmatprep.subr.mxu0 0.0
          %2260 = vmatpush1.msra.mxu0 0.0
          %2261 = vmatprep.subr.mxu0 0.0
          %2262 = vmatpush1.msra.mxu0 0.0
          %2263 = vmatprep.subr.mxu0 0.0
          %2264 = vmatpush1.msra.mxu0 0.0
          %2265 = vmatprep.subr.mxu0 0.0
          %2266 = vmatpush1.msra.mxu0 0.0
          %2267 = vmatprep.subr.mxu0 0.0
          %2268 = vmatpush1.msra.mxu0 0.0
          %2269 = vmatprep.subr.mxu0 0.0
          %2270 = vmatpush1.msra.mxu0 0.0
          %2271 = vmatprep.subr.mxu0 0.0
          %2272 = vmatpush1.msra.mxu0 0.0
          %2273 = vmatprep.subr.mxu0 0.0
          %2274 = vmatpush1.msra.mxu0 0.0
          %2275 = vmatprep.subr.mxu0 0.0
          %2276 = vmatpush1.msra.mxu0 0.0
          %2277 = vmatprep.subr.mxu0 0.0
          %2278 = vmatpush1.msra.mxu0 0.0
          %2279 = vmatprep.subr.mxu0 0.0
          %2280 = vmatpush1.msra.mxu0 0.0
          %2281 = vmatprep.subr.mxu0 0.0
          %2282 = vmatpush1.msra.mxu0 0.0
          %2283 = vmatprep.subr.mxu0 0.0
          %2284 = vmatpush1.msra.mxu0 0.0
          %2285 = vmatprep.subr.mxu0 0.0
          %2286 = vmatpush1.msra.mxu0 0.0
          %2287 = vmatprep.subr.mxu0 0.0
          %2288 = vmatpush1.msra.mxu0 0.0
          %2289 = vmatprep.subr.mxu0 0.0
          %2290 = vmatpush1.msra.mxu0 0.0
          %2291 = vmatprep.subr.mxu0 0.0
          %2292 = vmatpush1.msra.mxu0 0.0
          %2293 = vmatprep.subr.mxu0 0.0
          %2294 = vmatpush1.msra.mxu0 0.0
          %2295 = vmatprep.subr.mxu0 0.0
          %2296 = vmatpush1.msra.mxu0 0.0
          %2297 = vmatprep.subr.mxu0 0.0
          %2298 = vmatpush1.msra.mxu0 0.0
          %2299 = vmatprep.subr.mxu0 0.0
          %2300 = vmatpush1.msra.mxu0 0.0
          %2301 = vmatprep.subr.mxu0 0.0
          %2302 = vmatpush1.msra.mxu0 0.0
          %2303 = vmatprep.subr.mxu0 0.0
          %2304 = vmatpush1.msra.mxu0 0.0
          %2305 = vmatprep.subr.mxu0 0.0
          %2306 = vmatpush1.msra.mxu0 0.0
          %2307 = vmatprep.subr.mxu0 0.0
          %2308 = vmatpush1.msra.mxu0 0.0
          %2309 = vmatprep.subr.mxu0 0.0
          %2310 = vmatpush1.msra.mxu0 0.0
          %2311 = vmatprep.subr.mxu0 0.0
          %2312 = vmatpush1.msra.mxu0 0.0
          %2313 = vmatprep.subr.mxu0 0.0
          %2314 = vmatpush1.msra.mxu0 0.0
          %2315 = vmatprep.subr.mxu0 0.0
          %2316 = vmatpush1.msra.mxu0 0.0
          %2317 = vmatprep.mubr.f32.mxu0 0.0
          %2318 = vmatmul.mubr.f32.gmra.mrb[0].mxu0 %v2251
          %v2319 = vpop.f32.mrb[0].mxu0
          %v2320 = vadd.f32 0.0, %v2319
          %v2321 = vpop.f32.mrb[0].mxu0
          %2322 = vdwg.mxu0
          %vm2323 = vcmask 261120
          %v2324 = vsel %vm2323, %v2101, 0.0
          %v2325 = vsel %vm2323, %v2174, 0.0
          %v2326 = vadd.f32 %v2324, %v2325
          %v2327 = vsel %vm2323, %v2247, 0.0
          %v2328 = vadd.f32 %v2326, %v2327
          %v2329 = vsel %vm2323, %v2320, 0.0
          %v2330 = vadd.f32 %v2328, %v2329
          %2331 = vst.msk [vmem:[%s292] sm:$0xff] %vm2323, %v2330
        $region56: #{tpu_custom_call.1} parent=43 // pred_fallthru
          _
        %s2332 = sand.u32 %s189, 1
        %s2333 = scalar_lea.sflag [#allocation7], %s2332
        %s2334 = sand.u32 %s189, 1
        %s2335 = smul.addr %s2334, 8
        %s2336 = scalar_lea.vmem [#allocation6], %s2335
        // Predicated region
        $region57: #{tpu_custom_call.1} parent=43 // pred_check
          %p2337 = pneg %p199
        $region58: #{tpu_custom_call.1} parent=43 // pred_check_branch
          %2339 = sbr.rel (%p2337) target = $region60
        $region59: #{tpu_custom_call.1} parent=43 // pred_region
          %s2341 = ssub.s32 128, 128
          %2342 = vsyncadd %s2333, %s2341
          %s2343 = sadd.s32 %s26, %s25
          %s2344 = smul.addr %s2343, 128
          %s2345 = scalar_lea.hbm %s6, %s2344
          %s2347 = sshll.u32 %s2336, 4
          %s2348 = int_to_ptr.vmem [resolvable:$true] %s2347
          %2350 = dma.vmem_to_hbm [thread:$0]  %s2348, 128, %s2345, %s2333
        $region60: #{tpu_custom_call.1} parent=43 // pred_fallthru
          _
      $region44: #{tpu_custom_call.1} parent=5 // pred_fallthru
        _
      %p2351 = scmp.le.s32.totalorder 2, %s15
      // Predicated region
      $region61: #{tpu_custom_call.1} parent=5 // pred_check
        %p2352 = pneg %p2351
      $region62: #{tpu_custom_call.1} parent=5 // pred_check_branch
        %2354 = sbr.rel (%p2352) target = $region64
      $region63: #{tpu_custom_call.1} parent=5 // pred_region
        %s2355 = ssub.s32 %s15, 2
        // Predicated region
        $region65: #{tpu_custom_call.1} parent=63 // pred_check
          %p2356 = pneg %p205
        $region66: #{tpu_custom_call.1} parent=63 // pred_check_branch
          %2358 = sbr.rel (%p2356) target = $region68
        $region67: #{tpu_custom_call.1} parent=63 // pred_region
          %s2359 = sand.u32 %s190, 1
          %s2360 = scalar_lea.sflag [#allocation7], %s2359
          %s2361 = sand.u32 %s190, 1
          %s2362 = smul.addr %s2361, 8
          %s2363 = scalar_lea.vmem [#allocation6], %s2362
          %2364 = dma.done %s2360, 128
        $region68: #{tpu_custom_call.1} parent=63 // pred_fallthru
          _
      $region64: #{tpu_custom_call.1} parent=5 // pred_fallthru
        _
    $region6: #{tpu_custom_call.1} parent=1 // loop_footer
      %s19 = sadd.s32 1, %s15
    $region7: #{tpu_custom_call.1} parent=1 // loop_footer_branch
      %14 = sbr.rel target = $region3
    $region8: #{tpu_custom_call.1} parent=1 // loop_exit
      _
    %2365 = vsyncpa [#allocation7], 1
    %s2366 = scalar_lea.sflag [#allocation7], 1
    %2367 = vsyncpa %s2366, 1

</llo_original>
